<compile_context>
chip_gen: v5e
topology: v5e:2x2
jax: 0.10.0
libtpu: 0.0.40
codegen_flags: <defaults>
</compile_context>

<pallas_src>
import jax
import jax.numpy as jnp
from jax.experimental import pallas as pl
from jax.experimental.pallas import tpu as pltpu


# ----------------------- fused bidirectional GRU recurrence kernel -----------------------

_FULL_UNROLL_MAX = 16   # Python-unroll (fully static indices) up to this chunk size
_PARTIAL_UNROLL = 8


def make_gru_kernel(C, B, H):
    """Kernel over grid=(num_time_chunks,).  Per chunk it runs C sequential steps.
    gates_ref[j] holds the fused input gates [r_f|r_b|z_f|z_b|n_f|n_b] where the
    backward half was pre-reversed in time, so step j serves forward time j and
    backward original-time (T-1-j) simultaneously."""

    def kernel(gates_ref, whh_ref, bhn_ref, outf_ref, outb_ref, h_ref):
        @pl.when(pl.program_id(0) == 0)
        def _():
            h_ref[...] = jnp.zeros_like(h_ref)

        whh = whh_ref[...]                                   # (2H, 6H) bf16, block-diag fused
        bhn = jnp.broadcast_to(bhn_ref[...], (B, 2 * H))     # hoisted broadcast (loop-invariant)
        h = h_ref[...]                                       # (B, 2H) f32 [h_fwd | h_bwd]

        def one_step(pos_f, pos_b, h):
            gi = gates_ref[pos_f]                            # (B, 6H) f32
            hp = jnp.dot(h.astype(jnp.bfloat16), whh,
                         preferred_element_type=jnp.float32)  # (B, 6H) one MXU dot / step
            r = jax.nn.sigmoid(gi[:, :2 * H] + hp[:, :2 * H])
            z = jax.nn.sigmoid(gi[:, 2 * H:4 * H] + hp[:, 2 * H:4 * H])
            n = jnp.tanh(gi[:, 4 * H:] + r * (hp[:, 4 * H:] + bhn))
            h_new = (1.0 - z) * n + z * h
            outf_ref[pos_f] = h_new[:, :H]
            outb_ref[pos_b] = h_new[:, H:]
            return h_new

        if C <= _FULL_UNROLL_MAX:
            # fully static addressing: pos_f / pos_b are Python constants
            for j in range(C):
                h = one_step(j, C - 1 - j, h)
        else:
            def body(j, h):
                return one_step(j, C - 1 - j, h)
            h = jax.lax.fori_loop(0, C, body, h, unroll=_PARTIAL_UNROLL)

        h_ref[...] = h

    return kernel


def _pick_chunk(T, B, H, budget_bytes=4 << 20):
    """Largest divisor of T whose double-buffered gates+out blocks fit the budget."""
    per_t = 4 * B * (6 * H + 2 * H) * 2   # f32, gates + both outs, x2 double-buffer
    c = T
    while c > 1 and c * per_t > budget_bytes:
        c -= 1
        while T % c:
            c -= 1
    return c


def gru_bidir_layer(gates, whh_fused, bhn2, chunk=None):
    """gates: (T, B, 6H) fused input gates (bwd half pre-reversed in time).
    whh_fused: (2H, 6H) bf16 block-diagonal hidden weights.  bhn2: (1, 2H).
    Returns (out_fwd, out_bwd), each (T, B, H) in original time order."""
    T, B, G6 = gates.shape
    H = G6 // 6
    C = _pick_chunk(T, B, H) if chunk is None else chunk
    assert T % C == 0, "chunk must divide T"
    NC = T // C

    return pl.pallas_call(
        make_gru_kernel(C, B, H),
        out_shape=(jax.ShapeDtypeStruct((T, B, H), jnp.float32),
                   jax.ShapeDtypeStruct((T, B, H), jnp.float32)),
        grid_spec=pltpu.PrefetchScalarGridSpec(
            num_scalar_prefetch=0,
            grid=(NC,),
            in_specs=[
                pl.BlockSpec((C, B, G6), lambda c: (c, 0, 0)),       # fused gates chunk
                pl.BlockSpec((2 * H, 6 * H), lambda c: (0, 0)),      # resident fused W_hh
                pl.BlockSpec((1, 2 * H), lambda c: (0, 0)),          # resident b_hn
            ],
            out_specs=[
                pl.BlockSpec((C, B, H), lambda c: (c, 0, 0)),             # fwd, original order
                pl.BlockSpec((C, B, H), lambda c: (NC - 1 - c, 0, 0)),    # bwd, flip in index_map
            ],
            scratch_shapes=[pltpu.VMEM((B, 2 * H), jnp.float32)],    # carried hidden state
        ),
        compiler_params=pltpu.CompilerParams(
            dimension_semantics=("arbitrary",),       # recurrence => sequential time chunks
            vmem_limit_bytes=32 * 1024 * 1024),
    )(gates, whh_fused, bhn2)


# ---------------------------- final Linear + log_softmax kernel -----------------------------

def fc_logsoftmax_kernel(x_ref, w_ref, b_ref, out_ref):
    y = jnp.dot(x_ref[...], w_ref[...], preferred_element_type=jnp.float32) + b_ref[...]
    m = jnp.max(y, axis=-1, keepdims=True)
    lse = m + jnp.log(jnp.sum(jnp.exp(y - m), axis=-1, keepdims=True))
    out_ref[...] = y - lse


def fc_logsoftmax(x, w, b):
    B, F = x.shape
    O = w.shape[-1]
    O_pad = ((O + 127) // 128) * 128
    # Lane-dense output: pad logits to 128 lanes; padded columns get bias -1e30 so
    # they contribute nothing to the softmax and are sliced off afterwards.
    w_pad = jnp.zeros((F, O_pad), jnp.float32).at[:, :O].set(w)
    b_pad = jnp.full((1, O_pad), -1e30, jnp.float32).at[:, :O].set(b.reshape(1, O))
    out = pl.pallas_call(
        fc_logsoftmax_kernel,
        out_shape=jax.ShapeDtypeStruct((B, O_pad), jnp.float32),
        grid=(1,),
        in_specs=[
            pl.BlockSpec((B, F), lambda i: (0, 0)),
            pl.BlockSpec((F, O_pad), lambda i: (0, 0)),
            pl.BlockSpec((1, O_pad), lambda i: (0, 0)),
        ],
        out_specs=pl.BlockSpec((B, O_pad), lambda i: (0, 0)),
    )(x, w_pad, b_pad)
    return out[:, :O]


# -------------------------------------- full forward pass -----------------------------------

def bilstm_forward(x_btd, params, chunk=None):
    """x_btd: (B, T, input_size).  Returns (B, output_size) log-probabilities."""
    x = jnp.transpose(x_btd, (1, 0, 2)).astype(jnp.float32)   # (T, B, D)
    T, B, _ = x.shape
    prev_f = prev_b = None
    for layer in params["layers"]:
        wih, whh = layer["wih"], layer["whh"]       # (2, D_in, 3H), (2, H, 3H)
        b_ih, b_hh = layer["b_ih"], layer["b_hh"]   # (2, 3H), (2, 3H)
        H = whh.shape[1]

        # Fold b_ih (all gates) and b_hh (r, z gates) into the hoisted input gates.
        b_fold = b_ih + jnp.concatenate(
            [b_hh[:, :2 * H], jnp.zeros_like(b_hh[:, 2 * H:])], axis=-1)   # (2, 3H)

        # Hoisted input projections (one big XLA matmul per direction, off the serial path).
        if prev_f is None:
            gi_f = jnp.einsum("tbd,dk->tbk", x, wih[0])
            gi_b = jnp.einsum("tbd,dk->tbk", x, wih[1])
        else:
            # fwd/bwd concat of the previous layer folded into the projection
            w0 = wih[0].reshape(2, H, 3 * H)
            w1 = wih[1].reshape(2, H, 3 * H)
            gi_f = (jnp.einsum("tbh,hk->tbk", prev_f, w0[0])
                    + jnp.einsum("tbh,hk->tbk", prev_b, w0[1]))
            gi_b = (jnp.einsum("tbh,hk->tbk", prev_f, w1[0])
                    + jnp.einsum("tbh,hk->tbk", prev_b, w1[1]))
        gi_f = gi_f + b_fold[0]
        gi_b = (gi_b + b_fold[1])[::-1]             # pre-reverse backward gates (one HBM pass)

        # Interleave per gate: (T,B,6H) with lanes [r_f|r_b|z_f|z_b|n_f|n_b].
        G = jnp.stack([gi_f.reshape(T, B, 3, H),
                       gi_b.reshape(T, B, 3, H)], axis=3).reshape(T, B, 6 * H)

        # Block-diagonal fused hidden weights: (2H, 6H), bf16 MXU operands.
        wf = whh[0].reshape(H, 3, H)
        wb = whh[1].reshape(H, 3, H)
        zz = jnp.zeros_like(wf)
        w_top = jnp.stack([wf, zz], axis=2).reshape(H, 6 * H)   # h_fwd rows -> fwd gate cols
        w_bot = jnp.stack([zz, wb], axis=2).reshape(H, 6 * H)   # h_bwd rows -> bwd gate cols
        whh_fused = jnp.concatenate([w_top, w_bot], axis=0).astype(jnp.bfloat16)

        bhn2 = jnp.concatenate([b_hh[0, 2 * H:], b_hh[1, 2 * H:]]).reshape(1, 2 * H)

        prev_f, prev_b = gru_bidir_layer(G, whh_fused, bhn2, chunk=chunk)

    # outputs[:, -1, :] == concat(fwd@t=T-1, bwd@t=T-1)  (PyTorch bidirectional convention)
    last = jnp.concatenate([prev_f[-1], prev_b[-1]], axis=-1)   # (B, 2H)
    return fc_logsoftmax(last, params["fc_w"], params["fc_b"])


# --------------------------------- deterministic parameters ---------------------------------

def _uniform(key, shape, bound):
    return jax.random.uniform(key, shape, jnp.float32, -bound, bound)


def init_params(key, input_size, hidden, output, num_layers=2):
    bound = 1.0 / float(hidden) ** 0.5
    layers = []
    d_in = input_size
    for _ in range(num_layers):
        key, k1, k2, k3, k4 = jax.random.split(key, 5)
        layers.append(dict(
            wih=_uniform(k1, (2, d_in, 3 * hidden), bound),   # W_ih^T, gates fused [r|z|n]
            whh=_uniform(k2, (2, hidden, 3 * hidden), bound), # W_hh^T, gates fused
            b_ih=_uniform(k3, (2, 3 * hidden), bound),
            b_hh=_uniform(k4, (2, 3 * hidden), bound),
        ))
        d_in = 2 * hidden
    key, kw, kb = jax.random.split(key, 3)
    fb = 1.0 / float(2 * hidden) ** 0.5
    return dict(layers=layers,
                fc_w=_uniform(kw, (2 * hidden, output), fb),
                fc_b=_uniform(kb, (1, output), fb))


# ------------------------------------ pure-JAX reference ------------------------------------

def _gru_dir_ref(x_tbd, wih, whh, b_ih, b_hh, reverse):
    B = x_tbd.shape[1]
    H = whh.shape[0]

    def step(h, x):
        gi = x @ wih + b_ih
        gh = h @ whh + b_hh
        r = jax.nn.sigmoid(gi[:, :H] + gh[:, :H])
        z = jax.nn.sigmoid(gi[:, H:2 * H] + gh[:, H:2 * H])
        n = jnp.tanh(gi[:, 2 * H:] + r * gh[:, 2 * H:])
        h_new = (1.0 - z) * n + z * h
        return h_new, h_new

    _, ys = jax.lax.scan(step, jnp.zeros((B, H), jnp.float32), x_tbd, reverse=reverse)
    return ys   # original time order for both directions


def ref_forward(x_btd, params):
    h = jnp.transpose(x_btd, (1, 0, 2))
    for layer in params["layers"]:
        outs = [_gru_dir_ref(h, layer["wih"][d], layer["whh"][d],
                             layer["b_ih"][d], layer["b_hh"][d], reverse=bool(d))
                for d in (0, 1)]
        h = jnp.concatenate(outs, axis=-1)      # (T, B, 2H)
    y = h[-1] @ params["fc_w"] + params["fc_b"]
    return jax.nn.log_softmax(y, axis=-1)


# --------------------------------------------- main -----------------------------------------

if __name__ == "__main__":
    B, T, INPUT, HIDDEN, OUTPUT = 2, 8, 16, 32, 10

    key = jax.random.PRNGKey(0)
    kx, kp = jax.random.split(key)
    x = jax.random.normal(kx, (B, T, INPUT), jnp.float32)
    params = init_params(kp, INPUT, HIDDEN, OUTPUT, num_layers=2)

    fwd = jax.jit(bilstm_forward)
    out = jax.block_until_ready(fwd(x, params))
    assert out.shape == (B, OUTPUT), out.shape

    ref = jax.block_until_ready(jax.jit(ref_forward)(x, params))
    err = float(jnp.max(jnp.abs(out - ref)))
    # Tolerance loosened vs the pure-f32 version: the recurrent dot uses bf16 operands.
    assert jnp.allclose(out, ref, rtol=5e-2, atol=5e-2), "max abs err %.3e" % err

    print("KERNEL_OK")
</pallas_src>

<mosaic_0001>
module attributes {stable_mosaic.version = 11 : i64} {
  func.func @kernel(%arg0: i32, %arg1: memref<8x2x192xf32, #tpu.memory_space<vmem>>, %arg2: memref<64x192xbf16, #tpu.memory_space<vmem>>, %arg3: memref<1x64xf32, #tpu.memory_space<vmem>>, %arg4: memref<8x2x32xf32, #tpu.memory_space<vmem>>, %arg5: memref<8x2x32xf32, #tpu.memory_space<vmem>>, %arg6: memref<2x64xf32, #tpu.memory_space<vmem>>) attributes {dimension_semantics = [#tpu.dimension_semantics<arbitrary>], iteration_bounds = array<i64: 1>, scalar_prefetch = 0 : i64, scratch_operands = 1 : i64, tpu.core_type = #tpu.core_type<tc>, window_params = [{transform_indices = @transform_0, window_bounds = array<i64: 8, 2, 192>}, {pipeline_mode = #tpu.pipeline_mode<synchronous>, transform_indices = @transform_1, window_bounds = array<i64: 64, 192>}, {pipeline_mode = #tpu.pipeline_mode<synchronous>, transform_indices = @transform_2, window_bounds = array<i64: 1, 64>}, {transform_indices = @transform_3, window_bounds = array<i64: 8, 2, 32>}, {transform_indices = @transform_4, window_bounds = array<i64: 8, 2, 32>}]} {
    %c0_i32 = arith.constant 0 : i32
    %0 = arith.cmpi eq, %arg0, %c0_i32 : i32
    %1 = arith.extui %0 : i1 to i32
    %c0_i32_0 = arith.constant 0 : i32
    %2 = arith.cmpi ne, %1, %c0_i32_0 : i32
    scf.if %2 {
      %cst_104 = arith.constant 0.000000e+00 : f32
      %321 = vector.broadcast %cst_104 : f32 to vector<2x64xf32>
      %c0_105 = arith.constant 0 : index
      %c0_106 = arith.constant 0 : index
      %322 = vector.load %arg6[%c0_105, %c0_106] : memref<2x64xf32, #tpu.memory_space<vmem>>, vector<2x64xf32>
      tpu.vector_store %arg6[%c0_105, %c0_106], %321 {strides = array<i32>} : memref<2x64xf32, #tpu.memory_space<vmem>>, vector<2x64xf32>,
    } else {
    }
    %c0 = arith.constant 0 : index
    %c0_1 = arith.constant 0 : index
    %3 = vector.load %arg2[%c0, %c0_1] : memref<64x192xbf16, #tpu.memory_space<vmem>>, vector<64x192xbf16>
    %c0_2 = arith.constant 0 : index
    %c0_3 = arith.constant 0 : index
    %4 = vector.load %arg3[%c0_2, %c0_3] : memref<1x64xf32, #tpu.memory_space<vmem>>, vector<1x64xf32>
    %5 = vector.shape_cast %4 : vector<1x64xf32> to vector<1x64xf32>
    %6 = vector.broadcast %5 : vector<1x64xf32> to vector<2x64xf32>
    %c0_4 = arith.constant 0 : index
    %c0_5 = arith.constant 0 : index
    %7 = vector.load %arg6[%c0_4, %c0_5] : memref<2x64xf32, #tpu.memory_space<vmem>>, vector<2x64xf32>
    %c0_6 = arith.constant 0 : index
    %c0_7 = arith.constant 0 : index
    %c0_8 = arith.constant 0 : index
    %8 = vector.load %arg1[%c0_6, %c0_7, %c0_8] : memref<8x2x192xf32, #tpu.memory_space<vmem>>, vector<1x2x192xf32>
    %9 = vector.shape_cast %8 : vector<1x2x192xf32> to vector<2x192xf32>
    %10 = arith.truncf %7 : vector<2x64xf32> to vector<2x64xbf16>
    %cst = arith.constant dense<0.000000e+00> : vector<2x192xf32>
    %11 = tpu.matmul %10, %3, %cst {dimension_numbers = #tpu.dot_dimension_numbers<[1], [0], [0], [1], [0, 0, 1, 1], [], []>} : vector<2x64xbf16>, vector<64x192xbf16>, vector<2x192xf32> -> vector<2x192xf32>
    %12 = vector.extract_strided_slice %9 {offsets = [0, 0], sizes = [2, 64], strides = [1, 1]} : vector<2x192xf32> to vector<2x64xf32>
    %13 = vector.extract_strided_slice %11 {offsets = [0, 0], sizes = [2, 64], strides = [1, 1]} : vector<2x192xf32> to vector<2x64xf32>
    %14 = arith.addf %12, %13 : vector<2x64xf32>
    %15 = arith.negf %14 : vector<2x64xf32>
    %16 = math.exp %15 : vector<2x64xf32>
    %cst_9 = arith.constant 1.000000e+00 : f32
    %17 = vector.broadcast %cst_9 : f32 to vector<2x64xf32>
    %18 = arith.addf %17, %16 : vector<2x64xf32>
    %19 = arith.divf %17, %18 : vector<2x64xf32>
    %20 = vector.extract_strided_slice %9 {offsets = [0, 64], sizes = [2, 64], strides = [1, 1]} : vector<2x192xf32> to vector<2x64xf32>
    %21 = vector.extract_strided_slice %11 {offsets = [0, 64], sizes = [2, 64], strides = [1, 1]} : vector<2x192xf32> to vector<2x64xf32>
    %22 = arith.addf %20, %21 : vector<2x64xf32>
    %23 = arith.negf %22 : vector<2x64xf32>
    %24 = math.exp %23 : vector<2x64xf32>
    %cst_10 = arith.constant 1.000000e+00 : f32
    %25 = vector.broadcast %cst_10 : f32 to vector<2x64xf32>
    %26 = arith.addf %25, %24 : vector<2x64xf32>
    %27 = arith.divf %25, %26 : vector<2x64xf32>
    %28 = vector.extract_strided_slice %9 {offsets = [0, 128], sizes = [2, 64], strides = [1, 1]} : vector<2x192xf32> to vector<2x64xf32>
    %29 = vector.extract_strided_slice %11 {offsets = [0, 128], sizes = [2, 64], strides = [1, 1]} : vector<2x192xf32> to vector<2x64xf32>
    %30 = arith.addf %29, %6 : vector<2x64xf32>
    %31 = arith.mulf %19, %30 : vector<2x64xf32>
    %32 = arith.addf %28, %31 : vector<2x64xf32>
    %33 = math.tanh %32 : vector<2x64xf32>
    %cst_11 = arith.constant 1.000000e+00 : f32
    %34 = vector.broadcast %cst_11 : f32 to vector<2x64xf32>
    %35 = arith.subf %34, %27 : vector<2x64xf32>
    %36 = arith.mulf %35, %33 : vector<2x64xf32>
    %37 = arith.mulf %27, %7 : vector<2x64xf32>
    %38 = arith.addf %36, %37 : vector<2x64xf32>
    %39 = vector.extract_strided_slice %38 {offsets = [0, 0], sizes = [2, 32], strides = [1, 1]} : vector<2x64xf32> to vector<2x32xf32>
    %c0_12 = arith.constant 0 : index
    %c0_13 = arith.constant 0 : index
    %c0_14 = arith.constant 0 : index
    %40 = vector.load %arg4[%c0_12, %c0_13, %c0_14] : memref<8x2x32xf32, #tpu.memory_space<vmem>>, vector<1x2x32xf32>
    %41 = vector.shape_cast %40 : vector<1x2x32xf32> to vector<2x32xf32>
    %42 = vector.shape_cast %39 : vector<2x32xf32> to vector<1x2x32xf32>
    tpu.vector_store %arg4[%c0_12, %c0_13, %c0_14], %42 {strides = array<i32>} : memref<8x2x32xf32, #tpu.memory_space<vmem>>, vector<1x2x32xf32>,
    %43 = vector.extract_strided_slice %38 {offsets = [0, 32], sizes = [2, 32], strides = [1, 1]} : vector<2x64xf32> to vector<2x32xf32>
    %c7 = arith.constant 7 : index
    %c0_15 = arith.constant 0 : index
    %c0_16 = arith.constant 0 : index
    %44 = vector.load %arg5[%c7, %c0_15, %c0_16] : memref<8x2x32xf32, #tpu.memory_space<vmem>>, vector<1x2x32xf32>
    %45 = vector.shape_cast %44 : vector<1x2x32xf32> to vector<2x32xf32>
    %46 = vector.shape_cast %43 : vector<2x32xf32> to vector<1x2x32xf32>
    tpu.vector_store %arg5[%c7, %c0_15, %c0_16], %46 {strides = array<i32>} : memref<8x2x32xf32, #tpu.memory_space<vmem>>, vector<1x2x32xf32>,
    %c1 = arith.constant 1 : index
    %c0_17 = arith.constant 0 : index
    %c0_18 = arith.constant 0 : index
    %47 = vector.load %arg1[%c1, %c0_17, %c0_18] : memref<8x2x192xf32, #tpu.memory_space<vmem>>, vector<1x2x192xf32>
    %48 = vector.shape_cast %47 : vector<1x2x192xf32> to vector<2x192xf32>
    %49 = arith.truncf %38 : vector<2x64xf32> to vector<2x64xbf16>
    %cst_19 = arith.constant dense<0.000000e+00> : vector<2x192xf32>
    %50 = tpu.matmul %49, %3, %cst_19 {dimension_numbers = #tpu.dot_dimension_numbers<[1], [0], [0], [1], [0, 0, 1, 1], [], []>} : vector<2x64xbf16>, vector<64x192xbf16>, vector<2x192xf32> -> vector<2x192xf32>
    %51 = vector.extract_strided_slice %48 {offsets = [0, 0], sizes = [2, 64], strides = [1, 1]} : vector<2x192xf32> to vector<2x64xf32>
    %52 = vector.extract_strided_slice %50 {offsets = [0, 0], sizes = [2, 64], strides = [1, 1]} : vector<2x192xf32> to vector<2x64xf32>
    %53 = arith.addf %51, %52 : vector<2x64xf32>
    %54 = arith.negf %53 : vector<2x64xf32>
    %55 = math.exp %54 : vector<2x64xf32>
    %cst_20 = arith.constant 1.000000e+00 : f32
    %56 = vector.broadcast %cst_20 : f32 to vector<2x64xf32>
    %57 = arith.addf %56, %55 : vector<2x64xf32>
    %58 = arith.divf %56, %57 : vector<2x64xf32>
    %59 = vector.extract_strided_slice %48 {offsets = [0, 64], sizes = [2, 64], strides = [1, 1]} : vector<2x192xf32> to vector<2x64xf32>
    %60 = vector.extract_strided_slice %50 {offsets = [0, 64], sizes = [2, 64], strides = [1, 1]} : vector<2x192xf32> to vector<2x64xf32>
    %61 = arith.addf %59, %60 : vector<2x64xf32>
    %62 = arith.negf %61 : vector<2x64xf32>
    %63 = math.exp %62 : vector<2x64xf32>
    %cst_21 = arith.constant 1.000000e+00 : f32
    %64 = vector.broadcast %cst_21 : f32 to vector<2x64xf32>
    %65 = arith.addf %64, %63 : vector<2x64xf32>
    %66 = arith.divf %64, %65 : vector<2x64xf32>
    %67 = vector.extract_strided_slice %48 {offsets = [0, 128], sizes = [2, 64], strides = [1, 1]} : vector<2x192xf32> to vector<2x64xf32>
    %68 = vector.extract_strided_slice %50 {offsets = [0, 128], sizes = [2, 64], strides = [1, 1]} : vector<2x192xf32> to vector<2x64xf32>
    %69 = arith.addf %68, %6 : vector<2x64xf32>
    %70 = arith.mulf %58, %69 : vector<2x64xf32>
    %71 = arith.addf %67, %70 : vector<2x64xf32>
    %72 = math.tanh %71 : vector<2x64xf32>
    %cst_22 = arith.constant 1.000000e+00 : f32
    %73 = vector.broadcast %cst_22 : f32 to vector<2x64xf32>
    %74 = arith.subf %73, %66 : vector<2x64xf32>
    %75 = arith.mulf %74, %72 : vector<2x64xf32>
    %76 = arith.mulf %66, %38 : vector<2x64xf32>
    %77 = arith.addf %75, %76 : vector<2x64xf32>
    %78 = vector.extract_strided_slice %77 {offsets = [0, 0], sizes = [2, 32], strides = [1, 1]} : vector<2x64xf32> to vector<2x32xf32>
    %c1_23 = arith.constant 1 : index
    %c0_24 = arith.constant 0 : index
    %c0_25 = arith.constant 0 : index
    %79 = vector.load %arg4[%c1_23, %c0_24, %c0_25] : memref<8x2x32xf32, #tpu.memory_space<vmem>>, vector<1x2x32xf32>
    %80 = vector.shape_cast %79 : vector<1x2x32xf32> to vector<2x32xf32>
    %81 = vector.shape_cast %78 : vector<2x32xf32> to vector<1x2x32xf32>
    tpu.vector_store %arg4[%c1_23, %c0_24, %c0_25], %81 {strides = array<i32>} : memref<8x2x32xf32, #tpu.memory_space<vmem>>, vector<1x2x32xf32>,
    %82 = vector.extract_strided_slice %77 {offsets = [0, 32], sizes = [2, 32], strides = [1, 1]} : vector<2x64xf32> to vector<2x32xf32>
    %c6 = arith.constant 6 : index
    %c0_26 = arith.constant 0 : index
    %c0_27 = arith.constant 0 : index
    %83 = vector.load %arg5[%c6, %c0_26, %c0_27] : memref<8x2x32xf32, #tpu.memory_space<vmem>>, vector<1x2x32xf32>
    %84 = vector.shape_cast %83 : vector<1x2x32xf32> to vector<2x32xf32>
    %85 = vector.shape_cast %82 : vector<2x32xf32> to vector<1x2x32xf32>
    tpu.vector_store %arg5[%c6, %c0_26, %c0_27], %85 {strides = array<i32>} : memref<8x2x32xf32, #tpu.memory_space<vmem>>, vector<1x2x32xf32>,
    %c2 = arith.constant 2 : index
    %c0_28 = arith.constant 0 : index
    %c0_29 = arith.constant 0 : index
    %86 = vector.load %arg1[%c2, %c0_28, %c0_29] : memref<8x2x192xf32, #tpu.memory_space<vmem>>, vector<1x2x192xf32>
    %87 = vector.shape_cast %86 : vector<1x2x192xf32> to vector<2x192xf32>
    %88 = arith.truncf %77 : vector<2x64xf32> to vector<2x64xbf16>
    %cst_30 = arith.constant dense<0.000000e+00> : vector<2x192xf32>
    %89 = tpu.matmul %88, %3, %cst_30 {dimension_numbers = #tpu.dot_dimension_numbers<[1], [0], [0], [1], [0, 0, 1, 1], [], []>} : vector<2x64xbf16>, vector<64x192xbf16>, vector<2x192xf32> -> vector<2x192xf32>
    %90 = vector.extract_strided_slice %87 {offsets = [0, 0], sizes = [2, 64], strides = [1, 1]} : vector<2x192xf32> to vector<2x64xf32>
    %91 = vector.extract_strided_slice %89 {offsets = [0, 0], sizes = [2, 64], strides = [1, 1]} : vector<2x192xf32> to vector<2x64xf32>
    %92 = arith.addf %90, %91 : vector<2x64xf32>
    %93 = arith.negf %92 : vector<2x64xf32>
    %94 = math.exp %93 : vector<2x64xf32>
    %cst_31 = arith.constant 1.000000e+00 : f32
    %95 = vector.broadcast %cst_31 : f32 to vector<2x64xf32>
    %96 = arith.addf %95, %94 : vector<2x64xf32>
    %97 = arith.divf %95, %96 : vector<2x64xf32>
    %98 = vector.extract_strided_slice %87 {offsets = [0, 64], sizes = [2, 64], strides = [1, 1]} : vector<2x192xf32> to vector<2x64xf32>
    %99 = vector.extract_strided_slice %89 {offsets = [0, 64], sizes = [2, 64], strides = [1, 1]} : vector<2x192xf32> to vector<2x64xf32>
    %100 = arith.addf %98, %99 : vector<2x64xf32>
    %101 = arith.negf %100 : vector<2x64xf32>
    %102 = math.exp %101 : vector<2x64xf32>
    %cst_32 = arith.constant 1.000000e+00 : f32
    %103 = vector.broadcast %cst_32 : f32 to vector<2x64xf32>
    %104 = arith.addf %103, %102 : vector<2x64xf32>
    %105 = arith.divf %103, %104 : vector<2x64xf32>
    %106 = vector.extract_strided_slice %87 {offsets = [0, 128], sizes = [2, 64], strides = [1, 1]} : vector<2x192xf32> to vector<2x64xf32>
    %107 = vector.extract_strided_slice %89 {offsets = [0, 128], sizes = [2, 64], strides = [1, 1]} : vector<2x192xf32> to vector<2x64xf32>
    %108 = arith.addf %107, %6 : vector<2x64xf32>
    %109 = arith.mulf %97, %108 : vector<2x64xf32>
    %110 = arith.addf %106, %109 : vector<2x64xf32>
    %111 = math.tanh %110 : vector<2x64xf32>
    %cst_33 = arith.constant 1.000000e+00 : f32
    %112 = vector.broadcast %cst_33 : f32 to vector<2x64xf32>
    %113 = arith.subf %112, %105 : vector<2x64xf32>
    %114 = arith.mulf %113, %111 : vector<2x64xf32>
    %115 = arith.mulf %105, %77 : vector<2x64xf32>
    %116 = arith.addf %114, %115 : vector<2x64xf32>
    %117 = vector.extract_strided_slice %116 {offsets = [0, 0], sizes = [2, 32], strides = [1, 1]} : vector<2x64xf32> to vector<2x32xf32>
    %c2_34 = arith.constant 2 : index
    %c0_35 = arith.constant 0 : index
    %c0_36 = arith.constant 0 : index
    %118 = vector.load %arg4[%c2_34, %c0_35, %c0_36] : memref<8x2x32xf32, #tpu.memory_space<vmem>>, vector<1x2x32xf32>
    %119 = vector.shape_cast %118 : vector<1x2x32xf32> to vector<2x32xf32>
    %120 = vector.shape_cast %117 : vector<2x32xf32> to vector<1x2x32xf32>
    tpu.vector_store %arg4[%c2_34, %c0_35, %c0_36], %120 {strides = array<i32>} : memref<8x2x32xf32, #tpu.memory_space<vmem>>, vector<1x2x32xf32>,
    %121 = vector.extract_strided_slice %116 {offsets = [0, 32], sizes = [2, 32], strides = [1, 1]} : vector<2x64xf32> to vector<2x32xf32>
    %c5 = arith.constant 5 : index
    %c0_37 = arith.constant 0 : index
    %c0_38 = arith.constant 0 : index
    %122 = vector.load %arg5[%c5, %c0_37, %c0_38] : memref<8x2x32xf32, #tpu.memory_space<vmem>>, vector<1x2x32xf32>
    %123 = vector.shape_cast %122 : vector<1x2x32xf32> to vector<2x32xf32>
    %124 = vector.shape_cast %121 : vector<2x32xf32> to vector<1x2x32xf32>
    tpu.vector_store %arg5[%c5, %c0_37, %c0_38], %124 {strides = array<i32>} : memref<8x2x32xf32, #tpu.memory_space<vmem>>, vector<1x2x32xf32>,
    %c3 = arith.constant 3 : index
    %c0_39 = arith.constant 0 : index
    %c0_40 = arith.constant 0 : index
    %125 = vector.load %arg1[%c3, %c0_39, %c0_40] : memref<8x2x192xf32, #tpu.memory_space<vmem>>, vector<1x2x192xf32>
    %126 = vector.shape_cast %125 : vector<1x2x192xf32> to vector<2x192xf32>
    %127 = arith.truncf %116 : vector<2x64xf32> to vector<2x64xbf16>
    %cst_41 = arith.constant dense<0.000000e+00> : vector<2x192xf32>
    %128 = tpu.matmul %127, %3, %cst_41 {dimension_numbers = #tpu.dot_dimension_numbers<[1], [0], [0], [1], [0, 0, 1, 1], [], []>} : vector<2x64xbf16>, vector<64x192xbf16>, vector<2x192xf32> -> vector<2x192xf32>
    %129 = vector.extract_strided_slice %126 {offsets = [0, 0], sizes = [2, 64], strides = [1, 1]} : vector<2x192xf32> to vector<2x64xf32>
    %130 = vector.extract_strided_slice %128 {offsets = [0, 0], sizes = [2, 64], strides = [1, 1]} : vector<2x192xf32> to vector<2x64xf32>
    %131 = arith.addf %129, %130 : vector<2x64xf32>
    %132 = arith.negf %131 : vector<2x64xf32>
    %133 = math.exp %132 : vector<2x64xf32>
    %cst_42 = arith.constant 1.000000e+00 : f32
    %134 = vector.broadcast %cst_42 : f32 to vector<2x64xf32>
    %135 = arith.addf %134, %133 : vector<2x64xf32>
    %136 = arith.divf %134, %135 : vector<2x64xf32>
    %137 = vector.extract_strided_slice %126 {offsets = [0, 64], sizes = [2, 64], strides = [1, 1]} : vector<2x192xf32> to vector<2x64xf32>
    %138 = vector.extract_strided_slice %128 {offsets = [0, 64], sizes = [2, 64], strides = [1, 1]} : vector<2x192xf32> to vector<2x64xf32>
    %139 = arith.addf %137, %138 : vector<2x64xf32>
    %140 = arith.negf %139 : vector<2x64xf32>
    %141 = math.exp %140 : vector<2x64xf32>
    %cst_43 = arith.constant 1.000000e+00 : f32
    %142 = vector.broadcast %cst_43 : f32 to vector<2x64xf32>
    %143 = arith.addf %142, %141 : vector<2x64xf32>
    %144 = arith.divf %142, %143 : vector<2x64xf32>
    %145 = vector.extract_strided_slice %126 {offsets = [0, 128], sizes = [2, 64], strides = [1, 1]} : vector<2x192xf32> to vector<2x64xf32>
    %146 = vector.extract_strided_slice %128 {offsets = [0, 128], sizes = [2, 64], strides = [1, 1]} : vector<2x192xf32> to vector<2x64xf32>
    %147 = arith.addf %146, %6 : vector<2x64xf32>
    %148 = arith.mulf %136, %147 : vector<2x64xf32>
    %149 = arith.addf %145, %148 : vector<2x64xf32>
    %150 = math.tanh %149 : vector<2x64xf32>
    %cst_44 = arith.constant 1.000000e+00 : f32
    %151 = vector.broadcast %cst_44 : f32 to vector<2x64xf32>
    %152 = arith.subf %151, %144 : vector<2x64xf32>
    %153 = arith.mulf %152, %150 : vector<2x64xf32>
    %154 = arith.mulf %144, %116 : vector<2x64xf32>
    %155 = arith.addf %153, %154 : vector<2x64xf32>
    %156 = vector.extract_strided_slice %155 {offsets = [0, 0], sizes = [2, 32], strides = [1, 1]} : vector<2x64xf32> to vector<2x32xf32>
    %c3_45 = arith.constant 3 : index
    %c0_46 = arith.constant 0 : index
    %c0_47 = arith.constant 0 : index
    %157 = vector.load %arg4[%c3_45, %c0_46, %c0_47] : memref<8x2x32xf32, #tpu.memory_space<vmem>>, vector<1x2x32xf32>
    %158 = vector.shape_cast %157 : vector<1x2x32xf32> to vector<2x32xf32>
    %159 = vector.shape_cast %156 : vector<2x32xf32> to vector<1x2x32xf32>
    tpu.vector_store %arg4[%c3_45, %c0_46, %c0_47], %159 {strides = array<i32>} : memref<8x2x32xf32, #tpu.memory_space<vmem>>, vector<1x2x32xf32>,
    %160 = vector.extract_strided_slice %155 {offsets = [0, 32], sizes = [2, 32], strides = [1, 1]} : vector<2x64xf32> to vector<2x32xf32>
    %c4 = arith.constant 4 : index
    %c0_48 = arith.constant 0 : index
    %c0_49 = arith.constant 0 : index
    %161 = vector.load %arg5[%c4, %c0_48, %c0_49] : memref<8x2x32xf32, #tpu.memory_space<vmem>>, vector<1x2x32xf32>
    %162 = vector.shape_cast %161 : vector<1x2x32xf32> to vector<2x32xf32>
    %163 = vector.shape_cast %160 : vector<2x32xf32> to vector<1x2x32xf32>
    tpu.vector_store %arg5[%c4, %c0_48, %c0_49], %163 {strides = array<i32>} : memref<8x2x32xf32, #tpu.memory_space<vmem>>, vector<1x2x32xf32>,
    %c4_50 = arith.constant 4 : index
    %c0_51 = arith.constant 0 : index
    %c0_52 = arith.constant 0 : index
    %164 = vector.load %arg1[%c4_50, %c0_51, %c0_52] : memref<8x2x192xf32, #tpu.memory_space<vmem>>, vector<1x2x192xf32>
    %165 = vector.shape_cast %164 : vector<1x2x192xf32> to vector<2x192xf32>
    %166 = arith.truncf %155 : vector<2x64xf32> to vector<2x64xbf16>
    %cst_53 = arith.constant dense<0.000000e+00> : vector<2x192xf32>
    %167 = tpu.matmul %166, %3, %cst_53 {dimension_numbers = #tpu.dot_dimension_numbers<[1], [0], [0], [1], [0, 0, 1, 1], [], []>} : vector<2x64xbf16>, vector<64x192xbf16>, vector<2x192xf32> -> vector<2x192xf32>
    %168 = vector.extract_strided_slice %165 {offsets = [0, 0], sizes = [2, 64], strides = [1, 1]} : vector<2x192xf32> to vector<2x64xf32>
    %169 = vector.extract_strided_slice %167 {offsets = [0, 0], sizes = [2, 64], strides = [1, 1]} : vector<2x192xf32> to vector<2x64xf32>
    %170 = arith.addf %168, %169 : vector<2x64xf32>
    %171 = arith.negf %170 : vector<2x64xf32>
    %172 = math.exp %171 : vector<2x64xf32>
    %cst_54 = arith.constant 1.000000e+00 : f32
    %173 = vector.broadcast %cst_54 : f32 to vector<2x64xf32>
    %174 = arith.addf %173, %172 : vector<2x64xf32>
    %175 = arith.divf %173, %174 : vector<2x64xf32>
    %176 = vector.extract_strided_slice %165 {offsets = [0, 64], sizes = [2, 64], strides = [1, 1]} : vector<2x192xf32> to vector<2x64xf32>
    %177 = vector.extract_strided_slice %167 {offsets = [0, 64], sizes = [2, 64], strides = [1, 1]} : vector<2x192xf32> to vector<2x64xf32>
    %178 = arith.addf %176, %177 : vector<2x64xf32>
    %179 = arith.negf %178 : vector<2x64xf32>
    %180 = math.exp %179 : vector<2x64xf32>
    %cst_55 = arith.constant 1.000000e+00 : f32
    %181 = vector.broadcast %cst_55 : f32 to vector<2x64xf32>
    %182 = arith.addf %181, %180 : vector<2x64xf32>
    %183 = arith.divf %181, %182 : vector<2x64xf32>
    %184 = vector.extract_strided_slice %165 {offsets = [0, 128], sizes = [2, 64], strides = [1, 1]} : vector<2x192xf32> to vector<2x64xf32>
    %185 = vector.extract_strided_slice %167 {offsets = [0, 128], sizes = [2, 64], strides = [1, 1]} : vector<2x192xf32> to vector<2x64xf32>
    %186 = arith.addf %185, %6 : vector<2x64xf32>
    %187 = arith.mulf %175, %186 : vector<2x64xf32>
    %188 = arith.addf %184, %187 : vector<2x64xf32>
    %189 = math.tanh %188 : vector<2x64xf32>
    %cst_56 = arith.constant 1.000000e+00 : f32
    %190 = vector.broadcast %cst_56 : f32 to vector<2x64xf32>
    %191 = arith.subf %190, %183 : vector<2x64xf32>
    %192 = arith.mulf %191, %189 : vector<2x64xf32>
    %193 = arith.mulf %183, %155 : vector<2x64xf32>
    %194 = arith.addf %192, %193 : vector<2x64xf32>
    %195 = vector.extract_strided_slice %194 {offsets = [0, 0], sizes = [2, 32], strides = [1, 1]} : vector<2x64xf32> to vector<2x32xf32>
    %c4_57 = arith.constant 4 : index
    %c0_58 = arith.constant 0 : index
    %c0_59 = arith.constant 0 : index
    %196 = vector.load %arg4[%c4_57, %c0_58, %c0_59] : memref<8x2x32xf32, #tpu.memory_space<vmem>>, vector<1x2x32xf32>
    %197 = vector.shape_cast %196 : vector<1x2x32xf32> to vector<2x32xf32>
    %198 = vector.shape_cast %195 : vector<2x32xf32> to vector<1x2x32xf32>
    tpu.vector_store %arg4[%c4_57, %c0_58, %c0_59], %198 {strides = array<i32>} : memref<8x2x32xf32, #tpu.memory_space<vmem>>, vector<1x2x32xf32>,
    %199 = vector.extract_strided_slice %194 {offsets = [0, 32], sizes = [2, 32], strides = [1, 1]} : vector<2x64xf32> to vector<2x32xf32>
    %c3_60 = arith.constant 3 : index
    %c0_61 = arith.constant 0 : index
    %c0_62 = arith.constant 0 : index
    %200 = vector.load %arg5[%c3_60, %c0_61, %c0_62] : memref<8x2x32xf32, #tpu.memory_space<vmem>>, vector<1x2x32xf32>
    %201 = vector.shape_cast %200 : vector<1x2x32xf32> to vector<2x32xf32>
    %202 = vector.shape_cast %199 : vector<2x32xf32> to vector<1x2x32xf32>
    tpu.vector_store %arg5[%c3_60, %c0_61, %c0_62], %202 {strides = array<i32>} : memref<8x2x32xf32, #tpu.memory_space<vmem>>, vector<1x2x32xf32>,
    %c5_63 = arith.constant 5 : index
    %c0_64 = arith.constant 0 : index
    %c0_65 = arith.constant 0 : index
    %203 = vector.load %arg1[%c5_63, %c0_64, %c0_65] : memref<8x2x192xf32, #tpu.memory_space<vmem>>, vector<1x2x192xf32>
    %204 = vector.shape_cast %203 : vector<1x2x192xf32> to vector<2x192xf32>
    %205 = arith.truncf %194 : vector<2x64xf32> to vector<2x64xbf16>
    %cst_66 = arith.constant dense<0.000000e+00> : vector<2x192xf32>
    %206 = tpu.matmul %205, %3, %cst_66 {dimension_numbers = #tpu.dot_dimension_numbers<[1], [0], [0], [1], [0, 0, 1, 1], [], []>} : vector<2x64xbf16>, vector<64x192xbf16>, vector<2x192xf32> -> vector<2x192xf32>
    %207 = vector.extract_strided_slice %204 {offsets = [0, 0], sizes = [2, 64], strides = [1, 1]} : vector<2x192xf32> to vector<2x64xf32>
    %208 = vector.extract_strided_slice %206 {offsets = [0, 0], sizes = [2, 64], strides = [1, 1]} : vector<2x192xf32> to vector<2x64xf32>
    %209 = arith.addf %207, %208 : vector<2x64xf32>
    %210 = arith.negf %209 : vector<2x64xf32>
    %211 = math.exp %210 : vector<2x64xf32>
    %cst_67 = arith.constant 1.000000e+00 : f32
    %212 = vector.broadcast %cst_67 : f32 to vector<2x64xf32>
    %213 = arith.addf %212, %211 : vector<2x64xf32>
    %214 = arith.divf %212, %213 : vector<2x64xf32>
    %215 = vector.extract_strided_slice %204 {offsets = [0, 64], sizes = [2, 64], strides = [1, 1]} : vector<2x192xf32> to vector<2x64xf32>
    %216 = vector.extract_strided_slice %206 {offsets = [0, 64], sizes = [2, 64], strides = [1, 1]} : vector<2x192xf32> to vector<2x64xf32>
    %217 = arith.addf %215, %216 : vector<2x64xf32>
    %218 = arith.negf %217 : vector<2x64xf32>
    %219 = math.exp %218 : vector<2x64xf32>
    %cst_68 = arith.constant 1.000000e+00 : f32
    %220 = vector.broadcast %cst_68 : f32 to vector<2x64xf32>
    %221 = arith.addf %220, %219 : vector<2x64xf32>
    %222 = arith.divf %220, %221 : vector<2x64xf32>
    %223 = vector.extract_strided_slice %204 {offsets = [0, 128], sizes = [2, 64], strides = [1, 1]} : vector<2x192xf32> to vector<2x64xf32>
    %224 = vector.extract_strided_slice %206 {offsets = [0, 128], sizes = [2, 64], strides = [1, 1]} : vector<2x192xf32> to vector<2x64xf32>
    %225 = arith.addf %224, %6 : vector<2x64xf32>
    %226 = arith.mulf %214, %225 : vector<2x64xf32>
    %227 = arith.addf %223, %226 : vector<2x64xf32>
    %228 = math.tanh %227 : vector<2x64xf32>
    %cst_69 = arith.constant 1.000000e+00 : f32
    %229 = vector.broadcast %cst_69 : f32 to vector<2x64xf32>
    %230 = arith.subf %229, %222 : vector<2x64xf32>
    %231 = arith.mulf %230, %228 : vector<2x64xf32>
    %232 = arith.mulf %222, %194 : vector<2x64xf32>
    %233 = arith.addf %231, %232 : vector<2x64xf32>
    %234 = vector.extract_strided_slice %233 {offsets = [0, 0], sizes = [2, 32], strides = [1, 1]} : vector<2x64xf32> to vector<2x32xf32>
    %c5_70 = arith.constant 5 : index
    %c0_71 = arith.constant 0 : index
    %c0_72 = arith.constant 0 : index
    %235 = vector.load %arg4[%c5_70, %c0_71, %c0_72] : memref<8x2x32xf32, #tpu.memory_space<vmem>>, vector<1x2x32xf32>
    %236 = vector.shape_cast %235 : vector<1x2x32xf32> to vector<2x32xf32>
    %237 = vector.shape_cast %234 : vector<2x32xf32> to vector<1x2x32xf32>
    tpu.vector_store %arg4[%c5_70, %c0_71, %c0_72], %237 {strides = array<i32>} : memref<8x2x32xf32, #tpu.memory_space<vmem>>, vector<1x2x32xf32>,
    %238 = vector.extract_strided_slice %233 {offsets = [0, 32], sizes = [2, 32], strides = [1, 1]} : vector<2x64xf32> to vector<2x32xf32>
    %c2_73 = arith.constant 2 : index
    %c0_74 = arith.constant 0 : index
    %c0_75 = arith.constant 0 : index
    %239 = vector.load %arg5[%c2_73, %c0_74, %c0_75] : memref<8x2x32xf32, #tpu.memory_space<vmem>>, vector<1x2x32xf32>
    %240 = vector.shape_cast %239 : vector<1x2x32xf32> to vector<2x32xf32>
    %241 = vector.shape_cast %238 : vector<2x32xf32> to vector<1x2x32xf32>
    tpu.vector_store %arg5[%c2_73, %c0_74, %c0_75], %241 {strides = array<i32>} : memref<8x2x32xf32, #tpu.memory_space<vmem>>, vector<1x2x32xf32>,
    %c6_76 = arith.constant 6 : index
    %c0_77 = arith.constant 0 : index
    %c0_78 = arith.constant 0 : index
    %242 = vector.load %arg1[%c6_76, %c0_77, %c0_78] : memref<8x2x192xf32, #tpu.memory_space<vmem>>, vector<1x2x192xf32>
    %243 = vector.shape_cast %242 : vector<1x2x192xf32> to vector<2x192xf32>
    %244 = arith.truncf %233 : vector<2x64xf32> to vector<2x64xbf16>
    %cst_79 = arith.constant dense<0.000000e+00> : vector<2x192xf32>
    %245 = tpu.matmul %244, %3, %cst_79 {dimension_numbers = #tpu.dot_dimension_numbers<[1], [0], [0], [1], [0, 0, 1, 1], [], []>} : vector<2x64xbf16>, vector<64x192xbf16>, vector<2x192xf32> -> vector<2x192xf32>
    %246 = vector.extract_strided_slice %243 {offsets = [0, 0], sizes = [2, 64], strides = [1, 1]} : vector<2x192xf32> to vector<2x64xf32>
    %247 = vector.extract_strided_slice %245 {offsets = [0, 0], sizes = [2, 64], strides = [1, 1]} : vector<2x192xf32> to vector<2x64xf32>
    %248 = arith.addf %246, %247 : vector<2x64xf32>
    %249 = arith.negf %248 : vector<2x64xf32>
    %250 = math.exp %249 : vector<2x64xf32>
    %cst_80 = arith.constant 1.000000e+00 : f32
    %251 = vector.broadcast %cst_80 : f32 to vector<2x64xf32>
    %252 = arith.addf %251, %250 : vector<2x64xf32>
    %253 = arith.divf %251, %252 : vector<2x64xf32>
    %254 = vector.extract_strided_slice %243 {offsets = [0, 64], sizes = [2, 64], strides = [1, 1]} : vector<2x192xf32> to vector<2x64xf32>
    %255 = vector.extract_strided_slice %245 {offsets = [0, 64], sizes = [2, 64], strides = [1, 1]} : vector<2x192xf32> to vector<2x64xf32>
    %256 = arith.addf %254, %255 : vector<2x64xf32>
    %257 = arith.negf %256 : vector<2x64xf32>
    %258 = math.exp %257 : vector<2x64xf32>
    %cst_81 = arith.constant 1.000000e+00 : f32
    %259 = vector.broadcast %cst_81 : f32 to vector<2x64xf32>
    %260 = arith.addf %259, %258 : vector<2x64xf32>
    %261 = arith.divf %259, %260 : vector<2x64xf32>
    %262 = vector.extract_strided_slice %243 {offsets = [0, 128], sizes = [2, 64], strides = [1, 1]} : vector<2x192xf32> to vector<2x64xf32>
    %263 = vector.extract_strided_slice %245 {offsets = [0, 128], sizes = [2, 64], strides = [1, 1]} : vector<2x192xf32> to vector<2x64xf32>
    %264 = arith.addf %263, %6 : vector<2x64xf32>
    %265 = arith.mulf %253, %264 : vector<2x64xf32>
    %266 = arith.addf %262, %265 : vector<2x64xf32>
    %267 = math.tanh %266 : vector<2x64xf32>
    %cst_82 = arith.constant 1.000000e+00 : f32
    %268 = vector.broadcast %cst_82 : f32 to vector<2x64xf32>
    %269 = arith.subf %268, %261 : vector<2x64xf32>
    %270 = arith.mulf %269, %267 : vector<2x64xf32>
    %271 = arith.mulf %261, %233 : vector<2x64xf32>
    %272 = arith.addf %270, %271 : vector<2x64xf32>
    %273 = vector.extract_strided_slice %272 {offsets = [0, 0], sizes = [2, 32], strides = [1, 1]} : vector<2x64xf32> to vector<2x32xf32>
    %c6_83 = arith.constant 6 : index
    %c0_84 = arith.constant 0 : index
    %c0_85 = arith.constant 0 : index
    %274 = vector.load %arg4[%c6_83, %c0_84, %c0_85] : memref<8x2x32xf32, #tpu.memory_space<vmem>>, vector<1x2x32xf32>
    %275 = vector.shape_cast %274 : vector<1x2x32xf32> to vector<2x32xf32>
    %276 = vector.shape_cast %273 : vector<2x32xf32> to vector<1x2x32xf32>
    tpu.vector_store %arg4[%c6_83, %c0_84, %c0_85], %276 {strides = array<i32>} : memref<8x2x32xf32, #tpu.memory_space<vmem>>, vector<1x2x32xf32>,
    %277 = vector.extract_strided_slice %272 {offsets = [0, 32], sizes = [2, 32], strides = [1, 1]} : vector<2x64xf32> to vector<2x32xf32>
    %c1_86 = arith.constant 1 : index
    %c0_87 = arith.constant 0 : index
    %c0_88 = arith.constant 0 : index
    %278 = vector.load %arg5[%c1_86, %c0_87, %c0_88] : memref<8x2x32xf32, #tpu.memory_space<vmem>>, vector<1x2x32xf32>
    %279 = vector.shape_cast %278 : vector<1x2x32xf32> to vector<2x32xf32>
    %280 = vector.shape_cast %277 : vector<2x32xf32> to vector<1x2x32xf32>
    tpu.vector_store %arg5[%c1_86, %c0_87, %c0_88], %280 {strides = array<i32>} : memref<8x2x32xf32, #tpu.memory_space<vmem>>, vector<1x2x32xf32>,
    %c7_89 = arith.constant 7 : index
    %c0_90 = arith.constant 0 : index
    %c0_91 = arith.constant 0 : index
    %281 = vector.load %arg1[%c7_89, %c0_90, %c0_91] : memref<8x2x192xf32, #tpu.memory_space<vmem>>, vector<1x2x192xf32>
    %282 = vector.shape_cast %281 : vector<1x2x192xf32> to vector<2x192xf32>
    %283 = arith.truncf %272 : vector<2x64xf32> to vector<2x64xbf16>
    %cst_92 = arith.constant dense<0.000000e+00> : vector<2x192xf32>
    %284 = tpu.matmul %283, %3, %cst_92 {dimension_numbers = #tpu.dot_dimension_numbers<[1], [0], [0], [1], [0, 0, 1, 1], [], []>} : vector<2x64xbf16>, vector<64x192xbf16>, vector<2x192xf32> -> vector<2x192xf32>
    %285 = vector.extract_strided_slice %282 {offsets = [0, 0], sizes = [2, 64], strides = [1, 1]} : vector<2x192xf32> to vector<2x64xf32>
    %286 = vector.extract_strided_slice %284 {offsets = [0, 0], sizes = [2, 64], strides = [1, 1]} : vector<2x192xf32> to vector<2x64xf32>
    %287 = arith.addf %285, %286 : vector<2x64xf32>
    %288 = arith.negf %287 : vector<2x64xf32>
    %289 = math.exp %288 : vector<2x64xf32>
    %cst_93 = arith.constant 1.000000e+00 : f32
    %290 = vector.broadcast %cst_93 : f32 to vector<2x64xf32>
    %291 = arith.addf %290, %289 : vector<2x64xf32>
    %292 = arith.divf %290, %291 : vector<2x64xf32>
    %293 = vector.extract_strided_slice %282 {offsets = [0, 64], sizes = [2, 64], strides = [1, 1]} : vector<2x192xf32> to vector<2x64xf32>
    %294 = vector.extract_strided_slice %284 {offsets = [0, 64], sizes = [2, 64], strides = [1, 1]} : vector<2x192xf32> to vector<2x64xf32>
    %295 = arith.addf %293, %294 : vector<2x64xf32>
    %296 = arith.negf %295 : vector<2x64xf32>
    %297 = math.exp %296 : vector<2x64xf32>
    %cst_94 = arith.constant 1.000000e+00 : f32
    %298 = vector.broadcast %cst_94 : f32 to vector<2x64xf32>
    %299 = arith.addf %298, %297 : vector<2x64xf32>
    %300 = arith.divf %298, %299 : vector<2x64xf32>
    %301 = vector.extract_strided_slice %282 {offsets = [0, 128], sizes = [2, 64], strides = [1, 1]} : vector<2x192xf32> to vector<2x64xf32>
    %302 = vector.extract_strided_slice %284 {offsets = [0, 128], sizes = [2, 64], strides = [1, 1]} : vector<2x192xf32> to vector<2x64xf32>
    %303 = arith.addf %302, %6 : vector<2x64xf32>
    %304 = arith.mulf %292, %303 : vector<2x64xf32>
    %305 = arith.addf %301, %304 : vector<2x64xf32>
    %306 = math.tanh %305 : vector<2x64xf32>
    %cst_95 = arith.constant 1.000000e+00 : f32
    %307 = vector.broadcast %cst_95 : f32 to vector<2x64xf32>
    %308 = arith.subf %307, %300 : vector<2x64xf32>
    %309 = arith.mulf %308, %306 : vector<2x64xf32>
    %310 = arith.mulf %300, %272 : vector<2x64xf32>
    %311 = arith.addf %309, %310 : vector<2x64xf32>
    %312 = vector.extract_strided_slice %311 {offsets = [0, 0], sizes = [2, 32], strides = [1, 1]} : vector<2x64xf32> to vector<2x32xf32>
    %c7_96 = arith.constant 7 : index
    %c0_97 = arith.constant 0 : index
    %c0_98 = arith.constant 0 : index
    %313 = vector.load %arg4[%c7_96, %c0_97, %c0_98] : memref<8x2x32xf32, #tpu.memory_space<vmem>>, vector<1x2x32xf32>
    %314 = vector.shape_cast %313 : vector<1x2x32xf32> to vector<2x32xf32>
    %315 = vector.shape_cast %312 : vector<2x32xf32> to vector<1x2x32xf32>
    tpu.vector_store %arg4[%c7_96, %c0_97, %c0_98], %315 {strides = array<i32>} : memref<8x2x32xf32, #tpu.memory_space<vmem>>, vector<1x2x32xf32>,
    %316 = vector.extract_strided_slice %311 {offsets = [0, 32], sizes = [2, 32], strides = [1, 1]} : vector<2x64xf32> to vector<2x32xf32>
    %c0_99 = arith.constant 0 : index
    %c0_100 = arith.constant 0 : index
    %c0_101 = arith.constant 0 : index
    %317 = vector.load %arg5[%c0_99, %c0_100, %c0_101] : memref<8x2x32xf32, #tpu.memory_space<vmem>>, vector<1x2x32xf32>
    %318 = vector.shape_cast %317 : vector<1x2x32xf32> to vector<2x32xf32>
    %319 = vector.shape_cast %316 : vector<2x32xf32> to vector<1x2x32xf32>
    tpu.vector_store %arg5[%c0_99, %c0_100, %c0_101], %319 {strides = array<i32>} : memref<8x2x32xf32, #tpu.memory_space<vmem>>, vector<1x2x32xf32>,
    %c0_102 = arith.constant 0 : index
    %c0_103 = arith.constant 0 : index
    %320 = vector.load %arg6[%c0_102, %c0_103] : memref<2x64xf32, #tpu.memory_space<vmem>>, vector<2x64xf32>
    tpu.vector_store %arg6[%c0_102, %c0_103], %311 {strides = array<i32>} : memref<2x64xf32, #tpu.memory_space<vmem>>, vector<2x64xf32>,
    return
  }
  func.func @transform_0(%arg0: i32) -> (i32, i32, i32) {
    %c0_i32 = arith.constant 0 : i32
    %c0_i32_0 = arith.constant 0 : i32
    %c0_i32_1 = arith.constant 0 : i32
    return %arg0, %c0_i32, %c0_i32_0 : i32, i32, i32
  }
  func.func @transform_1(%arg0: i32) -> (i32, i32) {
    %c0_i32 = arith.constant 0 : i32
    %c0_i32_0 = arith.constant 0 : i32
    %c0_i32_1 = arith.constant 0 : i32
    return %c0_i32, %c0_i32_0 : i32, i32
  }
  func.func @transform_2(%arg0: i32) -> (i32, i32) {
    %c0_i32 = arith.constant 0 : i32
    %c0_i32_0 = arith.constant 0 : i32
    %c0_i32_1 = arith.constant 0 : i32
    return %c0_i32, %c0_i32_0 : i32, i32
  }
  func.func @transform_3(%arg0: i32) -> (i32, i32, i32) {
    %c0_i32 = arith.constant 0 : i32
    %c0_i32_0 = arith.constant 0 : i32
    %c0_i32_1 = arith.constant 0 : i32
    return %arg0, %c0_i32, %c0_i32_0 : i32, i32, i32
  }
  func.func @transform_4(%arg0: i32) -> (i32, i32, i32) {
    %c0_i32 = arith.constant 0 : i32
    %0 = arith.subi %c0_i32, %arg0 : i32
    %c0_i32_0 = arith.constant 0 : i32
    %c0_i32_1 = arith.constant 0 : i32
    %c0_i32_2 = arith.constant 0 : i32
    return %0, %c0_i32_0, %c0_i32_1 : i32, i32, i32
  }
}

module attributes {stable_mosaic.version = 11 : i64} {
  func.func @fc_logsoftmax_kernel(%arg0: i32, %arg1: memref<2x64xf32, #tpu.memory_space<vmem>>, %arg2: memref<64x128xf32, #tpu.memory_space<vmem>>, %arg3: memref<1x128xf32, #tpu.memory_space<vmem>>, %arg4: memref<2x128xf32, #tpu.memory_space<vmem>>) attributes {dimension_semantics = [#tpu.dimension_semantics<arbitrary>], iteration_bounds = array<i64: 1>, scalar_prefetch = 0 : i64, scratch_operands = 0 : i64, tpu.core_type = #tpu.core_type<tc>, window_params = [{pipeline_mode = #tpu.pipeline_mode<synchronous>, transform_indices = @transform_0, window_bounds = array<i64: 2, 64>}, {pipeline_mode = #tpu.pipeline_mode<synchronous>, transform_indices = @transform_1, window_bounds = array<i64: 64, 128>}, {pipeline_mode = #tpu.pipeline_mode<synchronous>, transform_indices = @transform_2, window_bounds = array<i64: 1, 128>}, {pipeline_mode = #tpu.pipeline_mode<synchronous>, transform_indices = @transform_3, window_bounds = array<i64: 2, 128>}]} {
    %c0 = arith.constant 0 : index
    %c0_0 = arith.constant 0 : index
    %0 = vector.load %arg1[%c0, %c0_0] : memref<2x64xf32, #tpu.memory_space<vmem>>, vector<2x64xf32>
    %c0_1 = arith.constant 0 : index
    %c0_2 = arith.constant 0 : index
    %1 = vector.load %arg2[%c0_1, %c0_2] : memref<64x128xf32, #tpu.memory_space<vmem>>, vector<64x128xf32>
    %cst = arith.constant dense<0.000000e+00> : vector<2x128xf32>
    %2 = tpu.matmul %0, %1, %cst {dimension_numbers = #tpu.dot_dimension_numbers<[1], [0], [0], [1], [0, 0, 1, 1], [], []>} : vector<2x64xf32>, vector<64x128xf32>, vector<2x128xf32> -> vector<2x128xf32>
    %c0_3 = arith.constant 0 : index
    %c0_4 = arith.constant 0 : index
    %3 = vector.load %arg3[%c0_3, %c0_4] : memref<1x128xf32, #tpu.memory_space<vmem>>, vector<1x128xf32>
    %4 = vector.broadcast %3 : vector<1x128xf32> to vector<2x128xf32>
    %5 = arith.addf %2, %4 : vector<2x128xf32>
    %cst_5 = arith.constant dense<0xFF800000> : vector<2xf32>
    %6 = vector.multi_reduction <maximumf>, %5, %cst_5 [1] : vector<2x128xf32> to vector<2xf32>
    %7 = vector.shape_cast %6 : vector<2xf32> to vector<2x1xf32>
    %8 = vector.broadcast %7 : vector<2x1xf32> to vector<2x128xf32>
    %9 = arith.subf %5, %8 : vector<2x128xf32>
    %10 = math.exp %9 : vector<2x128xf32>
    %cst_6 = arith.constant dense<0.000000e+00> : vector<2xf32>
    %11 = vector.multi_reduction <add>, %10, %cst_6 [1] : vector<2x128xf32> to vector<2xf32>
    %12 = vector.shape_cast %11 : vector<2xf32> to vector<2x1xf32>
    %13 = math.log %12 : vector<2x1xf32>
    %14 = arith.addf %7, %13 : vector<2x1xf32>
    %15 = vector.broadcast %14 : vector<2x1xf32> to vector<2x128xf32>
    %16 = arith.subf %5, %15 : vector<2x128xf32>
    %c0_7 = arith.constant 0 : index
    %c0_8 = arith.constant 0 : index
    %17 = vector.load %arg4[%c0_7, %c0_8] : memref<2x128xf32, #tpu.memory_space<vmem>>, vector<2x128xf32>
    tpu.vector_store %arg4[%c0_7, %c0_8], %16 {strides = array<i32>} : memref<2x128xf32, #tpu.memory_space<vmem>>, vector<2x128xf32>,
    return
  }
  func.func @transform_0(%arg0: i32) -> (i32, i32) {
    %c0_i32 = arith.constant 0 : i32
    %c0_i32_0 = arith.constant 0 : i32
    %c0_i32_1 = arith.constant 0 : i32
    return %c0_i32, %c0_i32_0 : i32, i32
  }
  func.func @transform_1(%arg0: i32) -> (i32, i32) {
    %c0_i32 = arith.constant 0 : i32
    %c0_i32_0 = arith.constant 0 : i32
    %c0_i32_1 = arith.constant 0 : i32
    return %c0_i32, %c0_i32_0 : i32, i32
  }
  func.func @transform_2(%arg0: i32) -> (i32, i32) {
    %c0_i32 = arith.constant 0 : i32
    %c0_i32_0 = arith.constant 0 : i32
    %c0_i32_1 = arith.constant 0 : i32
    return %c0_i32, %c0_i32_0 : i32, i32
  }
  func.func @transform_3(%arg0: i32) -> (i32, i32) {
    %c0_i32 = arith.constant 0 : i32
    %c0_i32_0 = arith.constant 0 : i32
    %c0_i32_1 = arith.constant 0 : i32
    return %c0_i32, %c0_i32_0 : i32, i32
  }
}

</mosaic_0001>

<llo_original>
// kernel: squeeze.5
$region0: #{squeeze.5}
  %s0 = inlined_call_operand.vmem [shape: bf16[1,32,96], index: 0, kind: input, shape index: {}]
  %s1 = inlined_call_operand.vmem [shape: bf16[32,3,1,32], index: 1, kind: output, shape index: {}]
  $region1: #{squeeze.5} parent=0
    #allocation0 [shape = 'u8[393216]{0}', space=vmem, size = 0x60000, scoped, tag = 'scoped mem for output reshape']
    #allocation1 [shape = 'u8[16384]{0}', space=vmem, size = 0x4000, scoped, tag = 'scoped mem for input reshape']
    %s3 = ssub.s32 256, 1
    %s4 = scalar_lea.vmem %s0, 12
    %s5 = sshrl.u32 %s3, 1
    %s6 = sor.u32 %s3, %s5
    %s7 = sand.u32 %s6, 85
    %s8 = sshrl.u32 %s7, 1
    %s9 = sor.u32 %s7, %s8
    %s10 = sand.u32 51, %s9
    %s11 = sshrl.u32 %s10, 2
    %s12 = sor.u32 %s10, %s11
    %s13 = sand.u32 15, %s12
    %v14 = vld [vmem:[%s4] sm:%s13]
    %v15 = vunpack.c.l.bf16 %v14
    %v16 = vunpack.c.h.bf16 %v14
    %s17 = scalar_lea.vmem [#allocation1], 24
    %18 = vst [vmem:[%s17] sm:%s3] %v15
    %s19 = scalar_lea.vmem %s0, 8
    %s20 = sshrl.u32 %s3, 1
    %s21 = sor.u32 %s3, %s20
    %s22 = sand.u32 %s21, 85
    %s23 = sshrl.u32 %s22, 1
    %s24 = sor.u32 %s22, %s23
    %s25 = sand.u32 51, %s24
    %s26 = sshrl.u32 %s25, 2
    %s27 = sor.u32 %s25, %s26
    %s28 = sand.u32 15, %s27
    %v29 = vld [vmem:[%s19] sm:%s28]
    %v30 = vunpack.c.l.bf16 %v29
    %v31 = vunpack.c.h.bf16 %v29
    %s32 = scalar_lea.vmem [#allocation1], 16
    %33 = vst [vmem:[%s32] sm:%s3] %v30
    %s34 = scalar_lea.vmem %s0, 4
    %s35 = sshrl.u32 %s3, 1
    %s36 = sor.u32 %s3, %s35
    %s37 = sand.u32 %s36, 85
    %s38 = sshrl.u32 %s37, 1
    %s39 = sor.u32 %s37, %s38
    %s40 = sand.u32 51, %s39
    %s41 = sshrl.u32 %s40, 2
    %s42 = sor.u32 %s40, %s41
    %s43 = sand.u32 15, %s42
    %v44 = vld [vmem:[%s34] sm:%s43]
    %v45 = vunpack.c.l.bf16 %v44
    %v46 = vunpack.c.h.bf16 %v44
    %s47 = scalar_lea.vmem [#allocation1], 8
    %48 = vst [vmem:[%s47] sm:%s3] %v45
    %s49 = sshrl.u32 %s3, 1
    %s50 = sor.u32 %s3, %s49
    %s51 = sand.u32 %s50, 85
    %s52 = sshrl.u32 %s51, 1
    %s53 = sor.u32 %s51, %s52
    %s54 = sand.u32 51, %s53
    %s55 = sshrl.u32 %s54, 2
    %s56 = sor.u32 %s54, %s55
    %s57 = sand.u32 15, %s56
    %v58 = vld [vmem:[%s0] sm:%s57]
    %v59 = vunpack.c.l.bf16 %v58
    %v60 = vunpack.c.h.bf16 %v58
    %61 = vst [vmem:[#allocation1] sm:%s3] %v59
    %v62 = vld [vmem:[#allocation1] sm:$0xff]
    %vm63 = vcmask 261120
    %64 = vst.msk [vmem:[#allocation0] ss:$24 sm:$0xf] %vm63, %v62
    %65 = vst.msk [vmem:[#allocation0] ss:$24 sm:$0xf0] %vm63, %v62
    %s66 = scalar_lea.vmem [#allocation1], 8
    %v67 = vld [vmem:[%s66] sm:$0xff]
    %vm68 = vcmask 261120
    %s69 = scalar_lea.vmem [#allocation0], 192
    %70 = vst.msk [vmem:[%s69] ss:$24 sm:$0xf] %vm68, %v67
    %s71 = scalar_lea.vmem [#allocation0], 192
    %72 = vst.msk [vmem:[%s71] ss:$24 sm:$0xf0] %vm68, %v67
    %s73 = scalar_lea.vmem [#allocation1], 16
    %v74 = vld [vmem:[%s73] sm:$0xff]
    %vm75 = vcmask 261120
    %s76 = scalar_lea.vmem [#allocation0], 384
    %77 = vst.msk [vmem:[%s76] ss:$24 sm:$0xf] %vm75, %v74
    %s78 = scalar_lea.vmem [#allocation0], 384
    %79 = vst.msk [vmem:[%s78] ss:$24 sm:$0xf0] %vm75, %v74
    %s80 = scalar_lea.vmem [#allocation1], 24
    %v81 = vld [vmem:[%s80] sm:$0xff]
    %vm82 = vcmask 261120
    %s83 = scalar_lea.vmem [#allocation0], 576
    %84 = vst.msk [vmem:[%s83] ss:$24 sm:$0xf] %vm82, %v81
    %s85 = scalar_lea.vmem [#allocation0], 576
    %86 = vst.msk [vmem:[%s85] ss:$24 sm:$0xf0] %vm82, %v81
    %v87 = vld.sshfl [vmem:[#allocation1] sm:$0xff pattern:$0x67452301]
    %88 = vrot.lane.b32.xlu0 %v87, 96
    %v89 = vpop.permute.xlu0 %88
    %vm90 = vcmask 261120
    %s91 = scalar_lea.vmem [#allocation0], 32
    %92 = vst.msk [vmem:[%s91] ss:$-24 sm:$0x3] %vm90, %v89
    %s93 = scalar_lea.vmem [#allocation0], 128
    %94 = vst.msk [vmem:[%s93] ss:$-24 sm:$0xc] %vm90, %v89
    %s95 = scalar_lea.vmem [#allocation0], 224
    %96 = vst.msk [vmem:[%s95] ss:$-24 sm:$0x30] %vm90, %v89
    %s97 = scalar_lea.vmem [#allocation0], 320
    %98 = vst.msk [vmem:[%s97] ss:$-24 sm:$0xc0] %vm90, %v89
    %s99 = scalar_lea.vmem [#allocation1], 8
    %v100 = vld.sshfl [vmem:[%s99] sm:$0xff pattern:$0x67452301]
    %101 = vrot.lane.b32.xlu0 %v100, 96
    %v102 = vpop.permute.xlu0 %101
    %vm103 = vcmask 261120
    %s104 = scalar_lea.vmem [#allocation0], 224
    %105 = vst.msk [vmem:[%s104] ss:$-24 sm:$0x3] %vm103, %v102
    %s106 = scalar_lea.vmem [#allocation0], 320
    %107 = vst.msk [vmem:[%s106] ss:$-24 sm:$0xc] %vm103, %v102
    %s108 = scalar_lea.vmem [#allocation0], 416
    %109 = vst.msk [vmem:[%s108] ss:$-24 sm:$0x30] %vm103, %v102
    %s110 = scalar_lea.vmem [#allocation0], 512
    %111 = vst.msk [vmem:[%s110] ss:$-24 sm:$0xc0] %vm103, %v102
    %s112 = scalar_lea.vmem [#allocation1], 16
    %v113 = vld.sshfl [vmem:[%s112] sm:$0xff pattern:$0x67452301]
    %114 = vrot.lane.b32.xlu0 %v113, 96
    %v115 = vpop.permute.xlu0 %114
    %vm116 = vcmask 261120
    %s117 = scalar_lea.vmem [#allocation0], 416
    %118 = vst.msk [vmem:[%s117] ss:$-24 sm:$0x3] %vm116, %v115
    %s119 = scalar_lea.vmem [#allocation0], 512
    %120 = vst.msk [vmem:[%s119] ss:$-24 sm:$0xc] %vm116, %v115
    %s121 = scalar_lea.vmem [#allocation0], 608
    %122 = vst.msk [vmem:[%s121] ss:$-24 sm:$0x30] %vm116, %v115
    %s123 = scalar_lea.vmem [#allocation0], 704
    %124 = vst.msk [vmem:[%s123] ss:$-24 sm:$0xc0] %vm116, %v115
    %s125 = scalar_lea.vmem [#allocation1], 24
    %v126 = vld.sshfl [vmem:[%s125] sm:$0xff pattern:$0x67452301]
    %127 = vrot.lane.b32.xlu0 %v126, 96
    %v128 = vpop.permute.xlu0 %127
    %vm129 = vcmask 261120
    %s130 = scalar_lea.vmem [#allocation0], 608
    %131 = vst.msk [vmem:[%s130] ss:$-24 sm:$0x3] %vm129, %v128
    %s132 = scalar_lea.vmem [#allocation0], 704
    %133 = vst.msk [vmem:[%s132] ss:$-24 sm:$0xc] %vm129, %v128
    %s134 = scalar_lea.vmem [#allocation0], 800
    %135 = vst.msk [vmem:[%s134] ss:$-24 sm:$0x30] %vm129, %v128
    %s136 = scalar_lea.vmem [#allocation0], 896
    %137 = vst.msk [vmem:[%s136] ss:$-24 sm:$0xc0] %vm129, %v128
    %v138 = vld.sshfl [vmem:[#allocation1] sm:$0xff pattern:$0x74563012]
    %139 = vrot.lane.b32.xlu0 %v138, 64
    %v140 = vpop.permute.xlu0 %139
    %vm141 = vcmask 261120
    %s142 = scalar_lea.vmem [#allocation0], 64
    %143 = vst.msk [vmem:[%s142] ss:$-24 sm:$0x7] %vm141, %v140
    %s144 = scalar_lea.vmem [#allocation0], 4294967168
    %145 = vst.msk [vmem:[%s144] ss:$72 sm:$0x18] %vm141, %v140
    %s146 = scalar_lea.vmem [#allocation0], 256
    %147 = vst.msk [vmem:[%s146] ss:$-24 sm:$0x60] %vm141, %v140
    %s148 = scalar_lea.vmem [#allocation0], 177
    %149 = vst.msk [vmem:[%s148] sm:$0x80] %vm141, %v140
    %s150 = scalar_lea.vmem [#allocation1], 8
    %v151 = vld.sshfl [vmem:[%s150] sm:$0xff pattern:$0x74563012]
    %152 = vrot.lane.b32.xlu0 %v151, 64
    %v153 = vpop.permute.xlu0 %152
    %vm154 = vcmask 261120
    %s155 = scalar_lea.vmem [#allocation0], 256
    %156 = vst.msk [vmem:[%s155] ss:$-24 sm:$0x7] %vm154, %v153
    %s157 = scalar_lea.vmem [#allocation0], 64
    %158 = vst.msk [vmem:[%s157] ss:$72 sm:$0x18] %vm154, %v153
    %s159 = scalar_lea.vmem [#allocation0], 448
    %160 = vst.msk [vmem:[%s159] ss:$-24 sm:$0x60] %vm154, %v153
    %s161 = scalar_lea.vmem [#allocation0], 369
    %162 = vst.msk [vmem:[%s161] sm:$0x80] %vm154, %v153
    %s163 = scalar_lea.vmem [#allocation1], 16
    %v164 = vld.sshfl [vmem:[%s163] sm:$0xff pattern:$0x74563012]
    %165 = vrot.lane.b32.xlu0 %v164, 64
    %v166 = vpop.permute.xlu0 %165
    %vm167 = vcmask 261120
    %s168 = scalar_lea.vmem [#allocation0], 448
    %169 = vst.msk [vmem:[%s168] ss:$-24 sm:$0x7] %vm167, %v166
    %s170 = scalar_lea.vmem [#allocation0], 256
    %171 = vst.msk [vmem:[%s170] ss:$72 sm:$0x18] %vm167, %v166
    %s172 = scalar_lea.vmem [#allocation0], 640
    %173 = vst.msk [vmem:[%s172] ss:$-24 sm:$0x60] %vm167, %v166
    %s174 = scalar_lea.vmem [#allocation0], 561
    %175 = vst.msk [vmem:[%s174] sm:$0x80] %vm167, %v166
    %s176 = scalar_lea.vmem [#allocation1], 24
    %v177 = vld.sshfl [vmem:[%s176] sm:$0xff pattern:$0x74563012]
    %178 = vrot.lane.b32.xlu0 %v177, 64
    %v179 = vpop.permute.xlu0 %178
    %vm180 = vcmask 261120
    %s181 = scalar_lea.vmem [#allocation0], 640
    %182 = vst.msk [vmem:[%s181] ss:$-24 sm:$0x7] %vm180, %v179
    %s183 = scalar_lea.vmem [#allocation0], 448
    %184 = vst.msk [vmem:[%s183] ss:$72 sm:$0x18] %vm180, %v179
    %s185 = scalar_lea.vmem [#allocation0], 832
    %186 = vst.msk [vmem:[%s185] ss:$-24 sm:$0x60] %vm180, %v179
    %s187 = scalar_lea.vmem [#allocation0], 753
    %188 = vst.msk [vmem:[%s187] sm:$0x80] %vm180, %v179
    %s190 = ssub.s32 4, 1
    %v191 = vld [vmem:[#allocation0] sm:%s190]
    %v192 = vpack.c.bf16 0.0, %v191
    %s194 = ssub.s32 2, 1
    %195 = vst [vmem:[%s1] sm:%s194] %v192
    %s196 = scalar_lea.vmem [#allocation0], 8
    %v197 = vld [vmem:[%s196] sm:%s190]
    %v198 = vpack.c.bf16 0.0, %v197
    %s200 = ssub.s32 2, 1
    %s201 = scalar_lea.vmem %s1, 1
    %202 = vst [vmem:[%s201] sm:%s200] %v198
    %s203 = scalar_lea.vmem [#allocation0], 16
    %v204 = vld [vmem:[%s203] sm:%s190]
    %v205 = vpack.c.bf16 0.0, %v204
    %s207 = ssub.s32 2, 1
    %s208 = scalar_lea.vmem %s1, 2
    %209 = vst [vmem:[%s208] sm:%s207] %v205
    %s210 = scalar_lea.vmem [#allocation0], 24
    %v211 = vld [vmem:[%s210] sm:%s190]
    %v212 = vpack.c.bf16 0.0, %v211
    %s214 = ssub.s32 2, 1
    %s215 = scalar_lea.vmem %s1, 3
    %216 = vst [vmem:[%s215] sm:%s214] %v212
    %s217 = scalar_lea.vmem [#allocation0], 32
    %v218 = vld [vmem:[%s217] sm:%s190]
    %v219 = vpack.c.bf16 0.0, %v218
    %s221 = ssub.s32 2, 1
    %s222 = scalar_lea.vmem %s1, 4
    %223 = vst [vmem:[%s222] sm:%s221] %v219
    %s224 = scalar_lea.vmem [#allocation0], 40
    %v225 = vld [vmem:[%s224] sm:%s190]
    %v226 = vpack.c.bf16 0.0, %v225
    %s228 = ssub.s32 2, 1
    %s229 = scalar_lea.vmem %s1, 5
    %230 = vst [vmem:[%s229] sm:%s228] %v226
    %s231 = scalar_lea.vmem [#allocation0], 48
    %v232 = vld [vmem:[%s231] sm:%s190]
    %v233 = vpack.c.bf16 0.0, %v232
    %s235 = ssub.s32 2, 1
    %s236 = scalar_lea.vmem %s1, 6
    %237 = vst [vmem:[%s236] sm:%s235] %v233
    %s238 = scalar_lea.vmem [#allocation0], 56
    %v239 = vld [vmem:[%s238] sm:%s190]
    %v240 = vpack.c.bf16 0.0, %v239
    %s242 = ssub.s32 2, 1
    %s243 = scalar_lea.vmem %s1, 7
    %244 = vst [vmem:[%s243] sm:%s242] %v240
    %s245 = scalar_lea.vmem [#allocation0], 64
    %v246 = vld [vmem:[%s245] sm:%s190]
    %v247 = vpack.c.bf16 0.0, %v246
    %s249 = ssub.s32 2, 1
    %s250 = scalar_lea.vmem %s1, 8
    %251 = vst [vmem:[%s250] sm:%s249] %v247
    %s252 = scalar_lea.vmem [#allocation0], 72
    %v253 = vld [vmem:[%s252] sm:%s190]
    %v254 = vpack.c.bf16 0.0, %v253
    %s256 = ssub.s32 2, 1
    %s257 = scalar_lea.vmem %s1, 9
    %258 = vst [vmem:[%s257] sm:%s256] %v254
    %s259 = scalar_lea.vmem [#allocation0], 80
    %v260 = vld [vmem:[%s259] sm:%s190]
    %v261 = vpack.c.bf16 0.0, %v260
    %s263 = ssub.s32 2, 1
    %s264 = scalar_lea.vmem %s1, 10
    %265 = vst [vmem:[%s264] sm:%s263] %v261
    %s266 = scalar_lea.vmem [#allocation0], 88
    %v267 = vld [vmem:[%s266] sm:%s190]
    %v268 = vpack.c.bf16 0.0, %v267
    %s270 = ssub.s32 2, 1
    %s271 = scalar_lea.vmem %s1, 11
    %272 = vst [vmem:[%s271] sm:%s270] %v268
    %s273 = scalar_lea.vmem [#allocation0], 96
    %v274 = vld [vmem:[%s273] sm:%s190]
    %v275 = vpack.c.bf16 0.0, %v274
    %s277 = ssub.s32 2, 1
    %s278 = scalar_lea.vmem %s1, 12
    %279 = vst [vmem:[%s278] sm:%s277] %v275
    %s280 = scalar_lea.vmem [#allocation0], 104
    %v281 = vld [vmem:[%s280] sm:%s190]
    %v282 = vpack.c.bf16 0.0, %v281
    %s284 = ssub.s32 2, 1
    %s285 = scalar_lea.vmem %s1, 13
    %286 = vst [vmem:[%s285] sm:%s284] %v282
    %s287 = scalar_lea.vmem [#allocation0], 112
    %v288 = vld [vmem:[%s287] sm:%s190]
    %v289 = vpack.c.bf16 0.0, %v288
    %s291 = ssub.s32 2, 1
    %s292 = scalar_lea.vmem %s1, 14
    %293 = vst [vmem:[%s292] sm:%s291] %v289
    %s294 = scalar_lea.vmem [#allocation0], 120
    %v295 = vld [vmem:[%s294] sm:%s190]
    %v296 = vpack.c.bf16 0.0, %v295
    %s298 = ssub.s32 2, 1
    %s299 = scalar_lea.vmem %s1, 15
    %300 = vst [vmem:[%s299] sm:%s298] %v296
    %s301 = scalar_lea.vmem [#allocation0], 128
    %v302 = vld [vmem:[%s301] sm:%s190]
    %v303 = vpack.c.bf16 0.0, %v302
    %s305 = ssub.s32 2, 1
    %s306 = scalar_lea.vmem %s1, 16
    %307 = vst [vmem:[%s306] sm:%s305] %v303
    %s308 = scalar_lea.vmem [#allocation0], 136
    %v309 = vld [vmem:[%s308] sm:%s190]
    %v310 = vpack.c.bf16 0.0, %v309
    %s312 = ssub.s32 2, 1
    %s313 = scalar_lea.vmem %s1, 17
    %314 = vst [vmem:[%s313] sm:%s312] %v310
    %s315 = scalar_lea.vmem [#allocation0], 144
    %v316 = vld [vmem:[%s315] sm:%s190]
    %v317 = vpack.c.bf16 0.0, %v316
    %s319 = ssub.s32 2, 1
    %s320 = scalar_lea.vmem %s1, 18
    %321 = vst [vmem:[%s320] sm:%s319] %v317
    %s322 = scalar_lea.vmem [#allocation0], 152
    %v323 = vld [vmem:[%s322] sm:%s190]
    %v324 = vpack.c.bf16 0.0, %v323
    %s326 = ssub.s32 2, 1
    %s327 = scalar_lea.vmem %s1, 19
    %328 = vst [vmem:[%s327] sm:%s326] %v324
    %s329 = scalar_lea.vmem [#allocation0], 160
    %v330 = vld [vmem:[%s329] sm:%s190]
    %v331 = vpack.c.bf16 0.0, %v330
    %s333 = ssub.s32 2, 1
    %s334 = scalar_lea.vmem %s1, 20
    %335 = vst [vmem:[%s334] sm:%s333] %v331
    %s336 = scalar_lea.vmem [#allocation0], 168
    %v337 = vld [vmem:[%s336] sm:%s190]
    %v338 = vpack.c.bf16 0.0, %v337
    %s340 = ssub.s32 2, 1
    %s341 = scalar_lea.vmem %s1, 21
    %342 = vst [vmem:[%s341] sm:%s340] %v338
    %s343 = scalar_lea.vmem [#allocation0], 176
    %v344 = vld [vmem:[%s343] sm:%s190]
    %v345 = vpack.c.bf16 0.0, %v344
    %s347 = ssub.s32 2, 1
    %s348 = scalar_lea.vmem %s1, 22
    %349 = vst [vmem:[%s348] sm:%s347] %v345
    %s350 = scalar_lea.vmem [#allocation0], 184
    %v351 = vld [vmem:[%s350] sm:%s190]
    %v352 = vpack.c.bf16 0.0, %v351
    %s354 = ssub.s32 2, 1
    %s355 = scalar_lea.vmem %s1, 23
    %356 = vst [vmem:[%s355] sm:%s354] %v352
    %s357 = scalar_lea.vmem [#allocation0], 192
    %v358 = vld [vmem:[%s357] sm:%s190]
    %v359 = vpack.c.bf16 0.0, %v358
    %s361 = ssub.s32 2, 1
    %s362 = scalar_lea.vmem %s1, 24
    %363 = vst [vmem:[%s362] sm:%s361] %v359
    %s364 = scalar_lea.vmem [#allocation0], 200
    %v365 = vld [vmem:[%s364] sm:%s190]
    %v366 = vpack.c.bf16 0.0, %v365
    %s368 = ssub.s32 2, 1
    %s369 = scalar_lea.vmem %s1, 25
    %370 = vst [vmem:[%s369] sm:%s368] %v366
    %s371 = scalar_lea.vmem [#allocation0], 208
    %v372 = vld [vmem:[%s371] sm:%s190]
    %v373 = vpack.c.bf16 0.0, %v372
    %s375 = ssub.s32 2, 1
    %s376 = scalar_lea.vmem %s1, 26
    %377 = vst [vmem:[%s376] sm:%s375] %v373
    %s378 = scalar_lea.vmem [#allocation0], 216
    %v379 = vld [vmem:[%s378] sm:%s190]
    %v380 = vpack.c.bf16 0.0, %v379
    %s382 = ssub.s32 2, 1
    %s383 = scalar_lea.vmem %s1, 27
    %384 = vst [vmem:[%s383] sm:%s382] %v380
    %s385 = scalar_lea.vmem [#allocation0], 224
    %v386 = vld [vmem:[%s385] sm:%s190]
    %v387 = vpack.c.bf16 0.0, %v386
    %s389 = ssub.s32 2, 1
    %s390 = scalar_lea.vmem %s1, 28
    %391 = vst [vmem:[%s390] sm:%s389] %v387
    %s392 = scalar_lea.vmem [#allocation0], 232
    %v393 = vld [vmem:[%s392] sm:%s190]
    %v394 = vpack.c.bf16 0.0, %v393
    %s396 = ssub.s32 2, 1
    %s397 = scalar_lea.vmem %s1, 29
    %398 = vst [vmem:[%s397] sm:%s396] %v394
    %s399 = scalar_lea.vmem [#allocation0], 240
    %v400 = vld [vmem:[%s399] sm:%s190]
    %v401 = vpack.c.bf16 0.0, %v400
    %s403 = ssub.s32 2, 1
    %s404 = scalar_lea.vmem %s1, 30
    %405 = vst [vmem:[%s404] sm:%s403] %v401
    %s406 = scalar_lea.vmem [#allocation0], 248
    %v407 = vld [vmem:[%s406] sm:%s190]
    %v408 = vpack.c.bf16 0.0, %v407
    %s410 = ssub.s32 2, 1
    %s411 = scalar_lea.vmem %s1, 31
    %412 = vst [vmem:[%s411] sm:%s410] %v408
    %s413 = scalar_lea.vmem [#allocation0], 256
    %v414 = vld [vmem:[%s413] sm:%s190]
    %v415 = vpack.c.bf16 0.0, %v414
    %s417 = ssub.s32 2, 1
    %s418 = scalar_lea.vmem %s1, 32
    %419 = vst [vmem:[%s418] sm:%s417] %v415
    %s420 = scalar_lea.vmem [#allocation0], 264
    %v421 = vld [vmem:[%s420] sm:%s190]
    %v422 = vpack.c.bf16 0.0, %v421
    %s424 = ssub.s32 2, 1
    %s425 = scalar_lea.vmem %s1, 33
    %426 = vst [vmem:[%s425] sm:%s424] %v422
    %s427 = scalar_lea.vmem [#allocation0], 272
    %v428 = vld [vmem:[%s427] sm:%s190]
    %v429 = vpack.c.bf16 0.0, %v428
    %s431 = ssub.s32 2, 1
    %s432 = scalar_lea.vmem %s1, 34
    %433 = vst [vmem:[%s432] sm:%s431] %v429
    %s434 = scalar_lea.vmem [#allocation0], 280
    %v435 = vld [vmem:[%s434] sm:%s190]
    %v436 = vpack.c.bf16 0.0, %v435
    %s438 = ssub.s32 2, 1
    %s439 = scalar_lea.vmem %s1, 35
    %440 = vst [vmem:[%s439] sm:%s438] %v436
    %s441 = scalar_lea.vmem [#allocation0], 288
    %v442 = vld [vmem:[%s441] sm:%s190]
    %v443 = vpack.c.bf16 0.0, %v442
    %s445 = ssub.s32 2, 1
    %s446 = scalar_lea.vmem %s1, 36
    %447 = vst [vmem:[%s446] sm:%s445] %v443
    %s448 = scalar_lea.vmem [#allocation0], 296
    %v449 = vld [vmem:[%s448] sm:%s190]
    %v450 = vpack.c.bf16 0.0, %v449
    %s452 = ssub.s32 2, 1
    %s453 = scalar_lea.vmem %s1, 37
    %454 = vst [vmem:[%s453] sm:%s452] %v450
    %s455 = scalar_lea.vmem [#allocation0], 304
    %v456 = vld [vmem:[%s455] sm:%s190]
    %v457 = vpack.c.bf16 0.0, %v456
    %s459 = ssub.s32 2, 1
    %s460 = scalar_lea.vmem %s1, 38
    %461 = vst [vmem:[%s460] sm:%s459] %v457
    %s462 = scalar_lea.vmem [#allocation0], 312
    %v463 = vld [vmem:[%s462] sm:%s190]
    %v464 = vpack.c.bf16 0.0, %v463
    %s466 = ssub.s32 2, 1
    %s467 = scalar_lea.vmem %s1, 39
    %468 = vst [vmem:[%s467] sm:%s466] %v464
    %s469 = scalar_lea.vmem [#allocation0], 320
    %v470 = vld [vmem:[%s469] sm:%s190]
    %v471 = vpack.c.bf16 0.0, %v470
    %s473 = ssub.s32 2, 1
    %s474 = scalar_lea.vmem %s1, 40
    %475 = vst [vmem:[%s474] sm:%s473] %v471
    %s476 = scalar_lea.vmem [#allocation0], 328
    %v477 = vld [vmem:[%s476] sm:%s190]
    %v478 = vpack.c.bf16 0.0, %v477
    %s480 = ssub.s32 2, 1
    %s481 = scalar_lea.vmem %s1, 41
    %482 = vst [vmem:[%s481] sm:%s480] %v478
    %s483 = scalar_lea.vmem [#allocation0], 336
    %v484 = vld [vmem:[%s483] sm:%s190]
    %v485 = vpack.c.bf16 0.0, %v484
    %s487 = ssub.s32 2, 1
    %s488 = scalar_lea.vmem %s1, 42
    %489 = vst [vmem:[%s488] sm:%s487] %v485
    %s490 = scalar_lea.vmem [#allocation0], 344
    %v491 = vld [vmem:[%s490] sm:%s190]
    %v492 = vpack.c.bf16 0.0, %v491
    %s494 = ssub.s32 2, 1
    %s495 = scalar_lea.vmem %s1, 43
    %496 = vst [vmem:[%s495] sm:%s494] %v492
    %s497 = scalar_lea.vmem [#allocation0], 352
    %v498 = vld [vmem:[%s497] sm:%s190]
    %v499 = vpack.c.bf16 0.0, %v498
    %s501 = ssub.s32 2, 1
    %s502 = scalar_lea.vmem %s1, 44
    %503 = vst [vmem:[%s502] sm:%s501] %v499
    %s504 = scalar_lea.vmem [#allocation0], 360
    %v505 = vld [vmem:[%s504] sm:%s190]
    %v506 = vpack.c.bf16 0.0, %v505
    %s508 = ssub.s32 2, 1
    %s509 = scalar_lea.vmem %s1, 45
    %510 = vst [vmem:[%s509] sm:%s508] %v506
    %s511 = scalar_lea.vmem [#allocation0], 368
    %v512 = vld [vmem:[%s511] sm:%s190]
    %v513 = vpack.c.bf16 0.0, %v512
    %s515 = ssub.s32 2, 1
    %s516 = scalar_lea.vmem %s1, 46
    %517 = vst [vmem:[%s516] sm:%s515] %v513
    %s518 = scalar_lea.vmem [#allocation0], 376
    %v519 = vld [vmem:[%s518] sm:%s190]
    %v520 = vpack.c.bf16 0.0, %v519
    %s522 = ssub.s32 2, 1
    %s523 = scalar_lea.vmem %s1, 47
    %524 = vst [vmem:[%s523] sm:%s522] %v520
    %s525 = scalar_lea.vmem [#allocation0], 384
    %v526 = vld [vmem:[%s525] sm:%s190]
    %v527 = vpack.c.bf16 0.0, %v526
    %s529 = ssub.s32 2, 1
    %s530 = scalar_lea.vmem %s1, 48
    %531 = vst [vmem:[%s530] sm:%s529] %v527
    %s532 = scalar_lea.vmem [#allocation0], 392
    %v533 = vld [vmem:[%s532] sm:%s190]
    %v534 = vpack.c.bf16 0.0, %v533
    %s536 = ssub.s32 2, 1
    %s537 = scalar_lea.vmem %s1, 49
    %538 = vst [vmem:[%s537] sm:%s536] %v534
    %s539 = scalar_lea.vmem [#allocation0], 400
    %v540 = vld [vmem:[%s539] sm:%s190]
    %v541 = vpack.c.bf16 0.0, %v540
    %s543 = ssub.s32 2, 1
    %s544 = scalar_lea.vmem %s1, 50
    %545 = vst [vmem:[%s544] sm:%s543] %v541
    %s546 = scalar_lea.vmem [#allocation0], 408
    %v547 = vld [vmem:[%s546] sm:%s190]
    %v548 = vpack.c.bf16 0.0, %v547
    %s550 = ssub.s32 2, 1
    %s551 = scalar_lea.vmem %s1, 51
    %552 = vst [vmem:[%s551] sm:%s550] %v548
    %s553 = scalar_lea.vmem [#allocation0], 416
    %v554 = vld [vmem:[%s553] sm:%s190]
    %v555 = vpack.c.bf16 0.0, %v554
    %s557 = ssub.s32 2, 1
    %s558 = scalar_lea.vmem %s1, 52
    %559 = vst [vmem:[%s558] sm:%s557] %v555
    %s560 = scalar_lea.vmem [#allocation0], 424
    %v561 = vld [vmem:[%s560] sm:%s190]
    %v562 = vpack.c.bf16 0.0, %v561
    %s564 = ssub.s32 2, 1
    %s565 = scalar_lea.vmem %s1, 53
    %566 = vst [vmem:[%s565] sm:%s564] %v562
    %s567 = scalar_lea.vmem [#allocation0], 432
    %v568 = vld [vmem:[%s567] sm:%s190]
    %v569 = vpack.c.bf16 0.0, %v568
    %s571 = ssub.s32 2, 1
    %s572 = scalar_lea.vmem %s1, 54
    %573 = vst [vmem:[%s572] sm:%s571] %v569
    %s574 = scalar_lea.vmem [#allocation0], 440
    %v575 = vld [vmem:[%s574] sm:%s190]
    %v576 = vpack.c.bf16 0.0, %v575
    %s578 = ssub.s32 2, 1
    %s579 = scalar_lea.vmem %s1, 55
    %580 = vst [vmem:[%s579] sm:%s578] %v576
    %s581 = scalar_lea.vmem [#allocation0], 448
    %v582 = vld [vmem:[%s581] sm:%s190]
    %v583 = vpack.c.bf16 0.0, %v582
    %s585 = ssub.s32 2, 1
    %s586 = scalar_lea.vmem %s1, 56
    %587 = vst [vmem:[%s586] sm:%s585] %v583
    %s588 = scalar_lea.vmem [#allocation0], 456
    %v589 = vld [vmem:[%s588] sm:%s190]
    %v590 = vpack.c.bf16 0.0, %v589
    %s592 = ssub.s32 2, 1
    %s593 = scalar_lea.vmem %s1, 57
    %594 = vst [vmem:[%s593] sm:%s592] %v590
    %s595 = scalar_lea.vmem [#allocation0], 464
    %v596 = vld [vmem:[%s595] sm:%s190]
    %v597 = vpack.c.bf16 0.0, %v596
    %s599 = ssub.s32 2, 1
    %s600 = scalar_lea.vmem %s1, 58
    %601 = vst [vmem:[%s600] sm:%s599] %v597
    %s602 = scalar_lea.vmem [#allocation0], 472
    %v603 = vld [vmem:[%s602] sm:%s190]
    %v604 = vpack.c.bf16 0.0, %v603
    %s606 = ssub.s32 2, 1
    %s607 = scalar_lea.vmem %s1, 59
    %608 = vst [vmem:[%s607] sm:%s606] %v604
    %s609 = scalar_lea.vmem [#allocation0], 480
    %v610 = vld [vmem:[%s609] sm:%s190]
    %v611 = vpack.c.bf16 0.0, %v610
    %s613 = ssub.s32 2, 1
    %s614 = scalar_lea.vmem %s1, 60
    %615 = vst [vmem:[%s614] sm:%s613] %v611
    %s616 = scalar_lea.vmem [#allocation0], 488
    %v617 = vld [vmem:[%s616] sm:%s190]
    %v618 = vpack.c.bf16 0.0, %v617
    %s620 = ssub.s32 2, 1
    %s621 = scalar_lea.vmem %s1, 61
    %622 = vst [vmem:[%s621] sm:%s620] %v618
    %s623 = scalar_lea.vmem [#allocation0], 496
    %v624 = vld [vmem:[%s623] sm:%s190]
    %v625 = vpack.c.bf16 0.0, %v624
    %s627 = ssub.s32 2, 1
    %s628 = scalar_lea.vmem %s1, 62
    %629 = vst [vmem:[%s628] sm:%s627] %v625
    %s630 = scalar_lea.vmem [#allocation0], 504
    %v631 = vld [vmem:[%s630] sm:%s190]
    %v632 = vpack.c.bf16 0.0, %v631
    %s634 = ssub.s32 2, 1
    %s635 = scalar_lea.vmem %s1, 63
    %636 = vst [vmem:[%s635] sm:%s634] %v632
    %s637 = scalar_lea.vmem [#allocation0], 512
    %v638 = vld [vmem:[%s637] sm:%s190]
    %v639 = vpack.c.bf16 0.0, %v638
    %s641 = ssub.s32 2, 1
    %s642 = scalar_lea.vmem %s1, 64
    %643 = vst [vmem:[%s642] sm:%s641] %v639
    %s644 = scalar_lea.vmem [#allocation0], 520
    %v645 = vld [vmem:[%s644] sm:%s190]
    %v646 = vpack.c.bf16 0.0, %v645
    %s648 = ssub.s32 2, 1
    %s649 = scalar_lea.vmem %s1, 65
    %650 = vst [vmem:[%s649] sm:%s648] %v646
    %s651 = scalar_lea.vmem [#allocation0], 528
    %v652 = vld [vmem:[%s651] sm:%s190]
    %v653 = vpack.c.bf16 0.0, %v652
    %s655 = ssub.s32 2, 1
    %s656 = scalar_lea.vmem %s1, 66
    %657 = vst [vmem:[%s656] sm:%s655] %v653
    %s658 = scalar_lea.vmem [#allocation0], 536
    %v659 = vld [vmem:[%s658] sm:%s190]
    %v660 = vpack.c.bf16 0.0, %v659
    %s662 = ssub.s32 2, 1
    %s663 = scalar_lea.vmem %s1, 67
    %664 = vst [vmem:[%s663] sm:%s662] %v660
    %s665 = scalar_lea.vmem [#allocation0], 544
    %v666 = vld [vmem:[%s665] sm:%s190]
    %v667 = vpack.c.bf16 0.0, %v666
    %s669 = ssub.s32 2, 1
    %s670 = scalar_lea.vmem %s1, 68
    %671 = vst [vmem:[%s670] sm:%s669] %v667
    %s672 = scalar_lea.vmem [#allocation0], 552
    %v673 = vld [vmem:[%s672] sm:%s190]
    %v674 = vpack.c.bf16 0.0, %v673
    %s676 = ssub.s32 2, 1
    %s677 = scalar_lea.vmem %s1, 69
    %678 = vst [vmem:[%s677] sm:%s676] %v674
    %s679 = scalar_lea.vmem [#allocation0], 560
    %v680 = vld [vmem:[%s679] sm:%s190]
    %v681 = vpack.c.bf16 0.0, %v680
    %s683 = ssub.s32 2, 1
    %s684 = scalar_lea.vmem %s1, 70
    %685 = vst [vmem:[%s684] sm:%s683] %v681
    %s686 = scalar_lea.vmem [#allocation0], 568
    %v687 = vld [vmem:[%s686] sm:%s190]
    %v688 = vpack.c.bf16 0.0, %v687
    %s690 = ssub.s32 2, 1
    %s691 = scalar_lea.vmem %s1, 71
    %692 = vst [vmem:[%s691] sm:%s690] %v688
    %s693 = scalar_lea.vmem [#allocation0], 576
    %v694 = vld [vmem:[%s693] sm:%s190]
    %v695 = vpack.c.bf16 0.0, %v694
    %s697 = ssub.s32 2, 1
    %s698 = scalar_lea.vmem %s1, 72
    %699 = vst [vmem:[%s698] sm:%s697] %v695
    %s700 = scalar_lea.vmem [#allocation0], 584
    %v701 = vld [vmem:[%s700] sm:%s190]
    %v702 = vpack.c.bf16 0.0, %v701
    %s704 = ssub.s32 2, 1
    %s705 = scalar_lea.vmem %s1, 73
    %706 = vst [vmem:[%s705] sm:%s704] %v702
    %s707 = scalar_lea.vmem [#allocation0], 592
    %v708 = vld [vmem:[%s707] sm:%s190]
    %v709 = vpack.c.bf16 0.0, %v708
    %s711 = ssub.s32 2, 1
    %s712 = scalar_lea.vmem %s1, 74
    %713 = vst [vmem:[%s712] sm:%s711] %v709
    %s714 = scalar_lea.vmem [#allocation0], 600
    %v715 = vld [vmem:[%s714] sm:%s190]
    %v716 = vpack.c.bf16 0.0, %v715
    %s718 = ssub.s32 2, 1
    %s719 = scalar_lea.vmem %s1, 75
    %720 = vst [vmem:[%s719] sm:%s718] %v716
    %s721 = scalar_lea.vmem [#allocation0], 608
    %v722 = vld [vmem:[%s721] sm:%s190]
    %v723 = vpack.c.bf16 0.0, %v722
    %s725 = ssub.s32 2, 1
    %s726 = scalar_lea.vmem %s1, 76
    %727 = vst [vmem:[%s726] sm:%s725] %v723
    %s728 = scalar_lea.vmem [#allocation0], 616
    %v729 = vld [vmem:[%s728] sm:%s190]
    %v730 = vpack.c.bf16 0.0, %v729
    %s732 = ssub.s32 2, 1
    %s733 = scalar_lea.vmem %s1, 77
    %734 = vst [vmem:[%s733] sm:%s732] %v730
    %s735 = scalar_lea.vmem [#allocation0], 624
    %v736 = vld [vmem:[%s735] sm:%s190]
    %v737 = vpack.c.bf16 0.0, %v736
    %s739 = ssub.s32 2, 1
    %s740 = scalar_lea.vmem %s1, 78
    %741 = vst [vmem:[%s740] sm:%s739] %v737
    %s742 = scalar_lea.vmem [#allocation0], 632
    %v743 = vld [vmem:[%s742] sm:%s190]
    %v744 = vpack.c.bf16 0.0, %v743
    %s746 = ssub.s32 2, 1
    %s747 = scalar_lea.vmem %s1, 79
    %748 = vst [vmem:[%s747] sm:%s746] %v744
    %s749 = scalar_lea.vmem [#allocation0], 640
    %v750 = vld [vmem:[%s749] sm:%s190]
    %v751 = vpack.c.bf16 0.0, %v750
    %s753 = ssub.s32 2, 1
    %s754 = scalar_lea.vmem %s1, 80
    %755 = vst [vmem:[%s754] sm:%s753] %v751
    %s756 = scalar_lea.vmem [#allocation0], 648
    %v757 = vld [vmem:[%s756] sm:%s190]
    %v758 = vpack.c.bf16 0.0, %v757
    %s760 = ssub.s32 2, 1
    %s761 = scalar_lea.vmem %s1, 81
    %762 = vst [vmem:[%s761] sm:%s760] %v758
    %s763 = scalar_lea.vmem [#allocation0], 656
    %v764 = vld [vmem:[%s763] sm:%s190]
    %v765 = vpack.c.bf16 0.0, %v764
    %s767 = ssub.s32 2, 1
    %s768 = scalar_lea.vmem %s1, 82
    %769 = vst [vmem:[%s768] sm:%s767] %v765
    %s770 = scalar_lea.vmem [#allocation0], 664
    %v771 = vld [vmem:[%s770] sm:%s190]
    %v772 = vpack.c.bf16 0.0, %v771
    %s774 = ssub.s32 2, 1
    %s775 = scalar_lea.vmem %s1, 83
    %776 = vst [vmem:[%s775] sm:%s774] %v772
    %s777 = scalar_lea.vmem [#allocation0], 672
    %v778 = vld [vmem:[%s777] sm:%s190]
    %v779 = vpack.c.bf16 0.0, %v778
    %s781 = ssub.s32 2, 1
    %s782 = scalar_lea.vmem %s1, 84
    %783 = vst [vmem:[%s782] sm:%s781] %v779
    %s784 = scalar_lea.vmem [#allocation0], 680
    %v785 = vld [vmem:[%s784] sm:%s190]
    %v786 = vpack.c.bf16 0.0, %v785
    %s788 = ssub.s32 2, 1
    %s789 = scalar_lea.vmem %s1, 85
    %790 = vst [vmem:[%s789] sm:%s788] %v786
    %s791 = scalar_lea.vmem [#allocation0], 688
    %v792 = vld [vmem:[%s791] sm:%s190]
    %v793 = vpack.c.bf16 0.0, %v792
    %s795 = ssub.s32 2, 1
    %s796 = scalar_lea.vmem %s1, 86
    %797 = vst [vmem:[%s796] sm:%s795] %v793
    %s798 = scalar_lea.vmem [#allocation0], 696
    %v799 = vld [vmem:[%s798] sm:%s190]
    %v800 = vpack.c.bf16 0.0, %v799
    %s802 = ssub.s32 2, 1
    %s803 = scalar_lea.vmem %s1, 87
    %804 = vst [vmem:[%s803] sm:%s802] %v800
    %s805 = scalar_lea.vmem [#allocation0], 704
    %v806 = vld [vmem:[%s805] sm:%s190]
    %v807 = vpack.c.bf16 0.0, %v806
    %s809 = ssub.s32 2, 1
    %s810 = scalar_lea.vmem %s1, 88
    %811 = vst [vmem:[%s810] sm:%s809] %v807
    %s812 = scalar_lea.vmem [#allocation0], 712
    %v813 = vld [vmem:[%s812] sm:%s190]
    %v814 = vpack.c.bf16 0.0, %v813
    %s816 = ssub.s32 2, 1
    %s817 = scalar_lea.vmem %s1, 89
    %818 = vst [vmem:[%s817] sm:%s816] %v814
    %s819 = scalar_lea.vmem [#allocation0], 720
    %v820 = vld [vmem:[%s819] sm:%s190]
    %v821 = vpack.c.bf16 0.0, %v820
    %s823 = ssub.s32 2, 1
    %s824 = scalar_lea.vmem %s1, 90
    %825 = vst [vmem:[%s824] sm:%s823] %v821
    %s826 = scalar_lea.vmem [#allocation0], 728
    %v827 = vld [vmem:[%s826] sm:%s190]
    %v828 = vpack.c.bf16 0.0, %v827
    %s830 = ssub.s32 2, 1
    %s831 = scalar_lea.vmem %s1, 91
    %832 = vst [vmem:[%s831] sm:%s830] %v828
    %s833 = scalar_lea.vmem [#allocation0], 736
    %v834 = vld [vmem:[%s833] sm:%s190]
    %v835 = vpack.c.bf16 0.0, %v834
    %s837 = ssub.s32 2, 1
    %s838 = scalar_lea.vmem %s1, 92
    %839 = vst [vmem:[%s838] sm:%s837] %v835
    %s840 = scalar_lea.vmem [#allocation0], 744
    %v841 = vld [vmem:[%s840] sm:%s190]
    %v842 = vpack.c.bf16 0.0, %v841
    %s844 = ssub.s32 2, 1
    %s845 = scalar_lea.vmem %s1, 93
    %846 = vst [vmem:[%s845] sm:%s844] %v842
    %s847 = scalar_lea.vmem [#allocation0], 752
    %v848 = vld [vmem:[%s847] sm:%s190]
    %v849 = vpack.c.bf16 0.0, %v848
    %s851 = ssub.s32 2, 1
    %s852 = scalar_lea.vmem %s1, 94
    %853 = vst [vmem:[%s852] sm:%s851] %v849
    %s854 = scalar_lea.vmem [#allocation0], 760
    %v855 = vld [vmem:[%s854] sm:%s190]
    %v856 = vpack.c.bf16 0.0, %v855
    %s858 = ssub.s32 2, 1
    %s859 = scalar_lea.vmem %s1, 95
    %860 = vst [vmem:[%s859] sm:%s858] %v856

// kernel: bilstm_forward.5
$region0: #{bilstm_forward.5}
  #allocation0 [shape = 'u32[]', space=smem, size = 0x4, offset = 0x4, fixed_abs, tag = 'smem constant byte address 0x4 - core index']
  #allocation1 [shape = 'u32[72,128]{1,0:T(1,128)}', space=vmem, size = 0x9000, scoped, tag = 'internal scratch']
  %s0 = inlined_call_operand.vmem [shape: f32[2,64], index: 0, kind: input, shape index: {}]
  %s1 = inlined_call_operand.vmem [shape: f32[64,128], index: 1, kind: input, shape index: {}]
  %s2 = inlined_call_operand.vmem [shape: f32[1,128], index: 2, kind: input, shape index: {}]
  %s3 = inlined_call_operand.hbm [shape: f32[2,128], index: 3, kind: output, shape index: {}]
  %s4 = sld [smem:[#allocation0]]
  $region22: #{bilstm_forward.5} parent=0
    _
  %s6 = ssub.s32 1, %s4
  %s7 = scalar_select 0, %s6, %s4
  $region1: #{bilstm_forward.5} parent=0
    #allocation2 [shape = 'u8[1024]{0}', space=vmem, size = 0x400, scoped, tag = 'output window, operand 0, single buffered']
    #allocation3 [shape = 's32[1]{0}', space=sflag, size = 0x4, scoped, tag = 'scoped memory for bilstm_forward.5']
    %8 = vsyncpa [#allocation3], 0
    // Predicated region
    $region2: #{bilstm_forward.5} parent=1 // pred_check
      _
    $region3: #{bilstm_forward.5} parent=1 // pred_check_branch
      %10 = sbr.rel (0) target = $region5
    $region4: #{bilstm_forward.5} parent=1 // pred_region
      _
    $region5: #{bilstm_forward.5} parent=1 // pred_fallthru
      _
    // Predicated region
    $region6: #{bilstm_forward.5} parent=1 // pred_check
      _
    $region7: #{bilstm_forward.5} parent=1 // pred_check_branch
      %12 = sbr.rel (0) target = $region9
    $region8: #{bilstm_forward.5} parent=1 // pred_region
      _
    $region9: #{bilstm_forward.5} parent=1 // pred_fallthru
      _
    // Predicated region
    $region10: #{bilstm_forward.5} parent=1 // pred_check
      _
    $region11: #{bilstm_forward.5} parent=1 // pred_check_branch
      %14 = sbr.rel (0) target = $region13
    $region12: #{bilstm_forward.5} parent=1 // pred_region
      _
    $region13: #{bilstm_forward.5} parent=1 // pred_fallthru
      _
    %v15 = vld [vmem:[%s0] sm:$0x3]
    %v16 = vld [vmem:[%s1] sm:$0xff]
    %v17 = vld [vmem:[%s1 + $0x8] sm:$0xff]
    %v18 = vld [vmem:[%s1 + $0x10] sm:$0xff]
    %v19 = vld [vmem:[%s1 + $0x18] sm:$0xff]
    %v20 = vld [vmem:[%s1 + $0x20] sm:$0xff]
    %v21 = vld [vmem:[%s1 + $0x28] sm:$0xff]
    %v22 = vld [vmem:[%s1 + $0x30] sm:$0xff]
    %v23 = vld [vmem:[%s1 + $0x38] sm:$0xff]
    %v24 = vld [vmem:[%s2] sm:$0x1]
    %v26 = vperm.slane %v24, 0
    %vm28 = vcmask 523264
    %v30 = vsel %vm28, %v15, 0
    %32 = vmatpush.msra.mxu0 0.0
    %33 = vmatpush.msra.mxu0 0.0
    %34 = vmatpush.msra.mxu0 0.0
    %35 = vmatpush.msra.mxu0 0.0
    %36 = vmatpush.msra.mxu0 0.0
    %37 = vmatpush.msra.mxu0 0.0
    %38 = vmatpush.msra.mxu0 0.0
    %39 = vmatpush.msra.mxu0 0.0
    %40 = vmatpush.msra.mxu0 %v23
    %41 = vmatpush.msra.mxu0 %v22
    %42 = vmatpush.msra.mxu0 %v21
    %43 = vmatpush.msra.mxu0 %v20
    %44 = vmatpush.msra.mxu0 %v19
    %45 = vmatpush.msra.mxu0 %v18
    %46 = vmatpush.msra.mxu0 %v17
    %47 = vmatpush.msra.mxu0 %v16
    %48 = vmatmul.f32.gmra.mxu0 %v30
    %v49 = vpop.f32.mrf.mxu0
    %v50 = vadd.f32 %v26, %v49
    %51 = vdwg.mxu0
    %vm52 = vcmask 1041408
    %v53 = vsel %vm52, %v50, -inf
    %54 = vmax.xlane.f32.xlu0 %v53
    %v55 = vpop.xlane.xlu0 %54
    %v56 = vsub.f32 %v50, %v55
    %v57 = vmul.f32 %v56, 1.442695
    %v58 = vpow.pop %v57
    %v59 = vsel %vm52, %v58, 0.0
    %60 = vadd.xlane.f32.xlu0 %v59
    %v61 = vpop.xlane.xlu0 %60
    %v62 = vlog2.pop %v61
    %v63 = vmul.f32 %v62, 0.6931472
    %v64 = vadd.f32 %v55, %v63
    %v65 = vsub.f32 %v50, %v64
    %66 = vst [vmem:[#allocation2] sm:$0x3] %v65
    // Predicated region
    $region14: #{bilstm_forward.5} parent=1 // pred_check
      _
    $region15: #{bilstm_forward.5} parent=1 // pred_check_branch
      %68 = sbr.rel (0) target = $region17
    $region16: #{bilstm_forward.5} parent=1 // pred_region
      %70 = vsyncadd [#allocation3], 0
      %s72 = sshll.u32 [#allocation2], 4
      %s73 = int_to_ptr.vmem [resolvable:$true] %s72
      %s74 = sshll.u32 %s3, 4
      %s75 = int_to_ptr.hbm [resolvable:$true] %s74
      %77 = dma.vmem_to_hbm [thread:$0]  %s73, 32, %s75, [#allocation3]
    $region17: #{bilstm_forward.5} parent=1 // pred_fallthru
      _
    // Predicated region
    $region18: #{bilstm_forward.5} parent=1 // pred_check
      _
    $region19: #{bilstm_forward.5} parent=1 // pred_check_branch
      %79 = sbr.rel (0) target = $region21
    $region20: #{bilstm_forward.5} parent=1 // pred_region
      %81 = dma.done [#allocation3], 32
    $region21: #{bilstm_forward.5} parent=1 // pred_fallthru
      _
    %82 = vsyncpa [#allocation3], 1

// kernel: bilstm_forward.3
$region0: #{bilstm_forward.3}
  #allocation0 [shape = 'u32[]', space=smem, size = 0x4, offset = 0x4, fixed_abs, tag = 'smem constant byte address 0x4 - core index']
  #allocation1 [shape = 'u32[72,128]{1,0:T(1,128)}', space=vmem, size = 0x9000, scoped, tag = 'internal scratch']
  #allocation2 [shape = 'f32[2,64]{1,0:T(2,128)}', space=vmem, size = 0x400, scoped, tag = 'scratch operand']
  %s0 = inlined_call_operand.vmem [shape: f32[8,2,192], index: 0, kind: input, shape index: {}]
  %s1 = inlined_call_operand.vmem [shape: bf16[64,192], index: 1, kind: input, shape index: {}]
  %s2 = inlined_call_operand.vmem [shape: f32[1,64], index: 2, kind: input, shape index: {}]
  %s3 = inlined_call_operand.vmem [shape: f32[8,2,32], index: 3, kind: output, shape index: {0}]
  %s4 = inlined_call_operand.vmem [shape: f32[8,2,32], index: 4, kind: output, shape index: {1}]
  %5 = xla_tuple %s3, %s4
  %s6 = sld [smem:[#allocation0]]
  $region34: #{bilstm_forward.3} parent=0
    _
  %s8 = ssub.s32 1, %s6
  %s9 = scalar_select 0, %s8, %s6
  // Predicated region
  $region2: #{bilstm_forward.3} parent=0 // pred_check
    _
  $region3: #{bilstm_forward.3} parent=0 // pred_check_branch
    %11 = sbr.rel (0) target = $region5
  $region4: #{bilstm_forward.3} parent=0 // pred_region
    _
  $region5: #{bilstm_forward.3} parent=0 // pred_fallthru
    _
  // Predicated region
  $region6: #{bilstm_forward.3} parent=0 // pred_check
    _
  $region7: #{bilstm_forward.3} parent=0 // pred_check_branch
    %13 = sbr.rel (0) target = $region9
  $region8: #{bilstm_forward.3} parent=0 // pred_region
    _
  $region9: #{bilstm_forward.3} parent=0 // pred_fallthru
    _
  // Predicated region
  $region10: #{bilstm_forward.3} parent=0 // pred_check
    _
  $region11: #{bilstm_forward.3} parent=0 // pred_check_branch
    %15 = sbr.rel (0) target = $region13
  $region12: #{bilstm_forward.3} parent=0 // pred_region
    _
  $region13: #{bilstm_forward.3} parent=0 // pred_fallthru
    _
  %s16 = ssub.s32 0, 0
  %s17 = smul.u32 8, %s16
  %p18 = scmp.lt.s32.totalorder %s17, 7
  %s19 = scalar_select %p18, %s17, 7
  %s20 = smul.addr %s19, 2
  %s21 = scalar_lea.vmem %s4, %s20
  %s22 = ssub.s32 0, 0
  %s23 = smul.u32 8, %s22
  %p24 = scmp.lt.s32.totalorder %s23, 7
  %s25 = scalar_select %p24, %s23, 7
  %s26 = smul.addr %s25, 2
  %s27 = scalar_lea.vmem %s4, %s26
  %s28 = ssub.s32 0, 0
  %s29 = smul.u32 8, %s28
  %p31 = scmp.eq.s32.totalorder 0, 0
  // Predicated region
  $region14: #{bilstm_forward.3} parent=0 // pred_check
    %p32 = pneg %p31
  $region15: #{bilstm_forward.3} parent=0 // pred_check_branch
    %34 = sbr.rel (%p32) target = $region17
  $region16: #{bilstm_forward.3} parent=0 // pred_region
    %vm35 = vcmask 517120
    %36 = vst.msk [vmem:[#allocation2] sm:$0x3] %vm35, 0.0
  $region17: #{bilstm_forward.3} parent=0 // pred_fallthru
    _
  %v37 = vld [vmem:[%s1] sm:$0xff]
  %v38 = vld [vmem:[%s1 + $0x8] sm:$0xff]
  %v39 = vld [vmem:[%s1 + $0x10] sm:$0xff]
  %v40 = vld [vmem:[%s1 + $0x18] sm:$0xff]
  %v41 = vld [vmem:[%s1 + $0x20] sm:$0xff]
  %v42 = vld [vmem:[%s1 + $0x28] sm:$0xff]
  %v43 = vld [vmem:[%s1 + $0x30] sm:$0xff]
  %v44 = vld [vmem:[%s1 + $0x38] sm:$0xff]
  %v45 = vld [vmem:[%s2] sm:$0x1]
  %v47 = vperm.slane %v45, 0
  %v49 = vld [vmem:[#allocation2] sm:$0x3]
  %v50 = vld [vmem:[%s0] sm:$0xf]
  %v51 = vpack.c.bf16 %v49, %v49
  %v60 = vunpack.c.l.b16 %v37
  %v61 = vunpack.c.h.b16 %v37
  %v62 = vunpack.c.l.b16 %v38
  %v63 = vunpack.c.h.b16 %v38
  %v64 = vunpack.c.l.b16 %v39
  %v65 = vunpack.c.h.b16 %v39
  %v66 = vunpack.c.l.b16 %v40
  %v67 = vunpack.c.h.b16 %v40
  %v68 = vunpack.c.l.b16 %v41
  %v69 = vunpack.c.h.b16 %v41
  %v70 = vunpack.c.l.b16 %v42
  %v71 = vunpack.c.h.b16 %v42
  %v72 = vunpack.c.l.b16 %v43
  %v73 = vunpack.c.h.b16 %v43
  %v74 = vunpack.c.l.b16 %v44
  %v75 = vunpack.c.h.b16 %v44
  %v76 = vpack.c.b16 %v62, %v60
  %v77 = vpack.c.b16 %v63, %v61
  %v78 = vpack.c.b16 %v66, %v64
  %v79 = vpack.c.b16 %v67, %v65
  %v80 = vpack.c.b16 %v70, %v68
  %v81 = vpack.c.b16 %v71, %v69
  %v82 = vpack.c.b16 %v74, %v72
  %v83 = vpack.c.b16 %v75, %v73
  %vm92 = vcmask 523264
  %v94 = vsel %vm92, %v51, 0
  %96 = vmatpush.bf16.msra.mxu0 0
  %97 = vmatpush.bf16.msra.mxu0 0
  %98 = vmatpush.bf16.msra.mxu0 0
  %99 = vmatpush.bf16.msra.mxu0 0
  %100 = vmatpush.bf16.msra.mxu0 %v82
  %101 = vmatpush.bf16.msra.mxu0 %v80
  %102 = vmatpush.bf16.msra.mxu0 %v78
  %103 = vmatpush.bf16.msra.mxu0 %v76
  %104 = vmatmul.bf16.gmra.mxu0 %v94
  %v105 = vpop.f32.mrf.mxu0
  %v106 = vadd.f32 0.0, %v105
  %v107 = vpop.f32.mrf.mxu0
  %108 = vdwg.mxu0
  %109 = vmatpush.bf16.msra.mxu0 0
  %110 = vmatpush.bf16.msra.mxu0 0
  %111 = vmatpush.bf16.msra.mxu0 0
  %112 = vmatpush.bf16.msra.mxu0 0
  %113 = vmatpush.bf16.msra.mxu0 %v83
  %114 = vmatpush.bf16.msra.mxu0 %v81
  %115 = vmatpush.bf16.msra.mxu0 %v79
  %116 = vmatpush.bf16.msra.mxu0 %v77
  %117 = vmatmul.bf16.gmra.mxu0 %v94
  %v118 = vpop.f32.mrf.mxu0
  %v119 = vadd.f32 0.0, %v118
  %v120 = vpop.f32.mrf.mxu0
  %121 = vdwg.mxu0
  %v122 = vadd.f32 %v50, %v106
  %v123 = vxor.u32 %v122, 2147483648
  %v124 = vmul.f32 %v123, 1.442695
  %v125 = vpow.pop %v124
  %v126 = vadd.f32 %v125, 1.0
  %v127 = vrcp.pop %v126
  %v128 = vmul.f32 %v126, %v127
  %v129 = vsub.f32 1.0, %v128
  %v130 = vmul.f32 %v127, %v129
  %v131 = vadd.f32 %v127, %v130
  %vm132 = vweird.f32 %v126
  %vm133 = vweird.f32 %v127
  %vm134 = vmor %vm132, %vm133
  %v135 = vsel %vm134, %v127, %v131
  %v136 = vand.u32 2147483647, %v126
  %vm137 = vcmp.eq.f32.partialorder %v136, 8.507059e+37
  %v138 = vand.u32 %v126, 2147483648
  %v139 = vor.u32 1.1754944e-38, %v138
  %v140 = vsel %vm137, %v139, %v135
  %v141 = vmul.f32 1.0, %v140
  %v142 = vadd.f32 %v119, %v47
  %v143 = vmul.f32 %v141, %v142
  %v145 = vrot.slane %v50, 2
  %v147 = vadd.f32 %v145, %v143
  %v148 = vtanh.pop %v147
  %v149 = vsub.f32 1.0, %v141
  %151 = vrot.lane.b32.xlu0 %v148, 64
  %v152 = vpop.permute.xlu0 %151
  %v154 = vmul.f32 %v149, %v152
  %156 = vrot.lane.b32.xlu0 %v49, 64
  %v157 = vpop.permute.xlu0 %156
  %v159 = vmul.f32 %v141, %v157
  %v160 = vadd.f32 %v154, %v159
  %162 = vst [vmem:[#allocation1] ss:$4 sm:$0xff] %v160
  %v163 = vld.sshfl [vmem:[#allocation1] sm:$0xff pattern:$0x73625140]
  %164 = vrot.lane.b32.xlu0 %v163, 64
  %v165 = vpop.permute.xlu0 %164
  %vm167 = vcmask 254976
  %168 = vst.msk [vmem:[%s3] sm:$0x3] %vm167, %v165
  %169 = vst [vmem:[#allocation1] ss:$4 sm:$0xff] %v160
  %v170 = vld.sshfl [vmem:[#allocation1] sm:$0xff pattern:$0x73625140]
  %171 = vrot.lane.b32.xlu0 %v170, 32
  %v172 = vpop.permute.xlu0 %171
  %s174 = scalar_lea.vmem %s27, 14
  %175 = vst.msk [vmem:[%s174] sm:$0x3] %vm167, %v172
  %s176 = scalar_lea.vmem %s0, 4
  %v177 = vld [vmem:[%s176] sm:$0xf]
  %v178 = vpack.c.bf16 %v160, %v160
  %180 = vrot.lane.b32.xlu0 %v178, 64
  %v181 = vpop.permute.xlu0 %180
  %v183 = vsel %vm92, %v181, 0
  %185 = vmatpush.bf16.msra.mxu0 0
  %186 = vmatpush.bf16.msra.mxu0 0
  %187 = vmatpush.bf16.msra.mxu0 0
  %188 = vmatpush.bf16.msra.mxu0 0
  %189 = vmatpush.bf16.msra.mxu0 %v82
  %190 = vmatpush.bf16.msra.mxu0 %v80
  %191 = vmatpush.bf16.msra.mxu0 %v78
  %192 = vmatpush.bf16.msra.mxu0 %v76
  %193 = vmatmul.bf16.gmra.mxu0 %v183
  %v194 = vpop.f32.mrf.mxu0
  %v195 = vadd.f32 0.0, %v194
  %v196 = vpop.f32.mrf.mxu0
  %197 = vdwg.mxu0
  %198 = vmatpush.bf16.msra.mxu0 0
  %199 = vmatpush.bf16.msra.mxu0 0
  %200 = vmatpush.bf16.msra.mxu0 0
  %201 = vmatpush.bf16.msra.mxu0 0
  %202 = vmatpush.bf16.msra.mxu0 %v83
  %203 = vmatpush.bf16.msra.mxu0 %v81
  %204 = vmatpush.bf16.msra.mxu0 %v79
  %205 = vmatpush.bf16.msra.mxu0 %v77
  %206 = vmatmul.bf16.gmra.mxu0 %v183
  %v207 = vpop.f32.mrf.mxu0
  %v208 = vadd.f32 0.0, %v207
  %v209 = vpop.f32.mrf.mxu0
  %210 = vdwg.mxu0
  %v211 = vadd.f32 %v177, %v195
  %v212 = vxor.u32 %v211, 2147483648
  %v213 = vmul.f32 %v212, 1.442695
  %v214 = vpow.pop %v213
  %v215 = vadd.f32 %v214, 1.0
  %v216 = vrcp.pop %v215
  %v217 = vmul.f32 %v215, %v216
  %v218 = vsub.f32 1.0, %v217
  %v219 = vmul.f32 %v216, %v218
  %v220 = vadd.f32 %v216, %v219
  %vm221 = vweird.f32 %v215
  %vm222 = vweird.f32 %v216
  %vm223 = vmor %vm221, %vm222
  %v224 = vsel %vm223, %v216, %v220
  %v225 = vand.u32 2147483647, %v215
  %vm226 = vcmp.eq.f32.partialorder %v225, 8.507059e+37
  %v227 = vand.u32 %v215, 2147483648
  %v228 = vor.u32 1.1754944e-38, %v227
  %v229 = vsel %vm226, %v228, %v224
  %v230 = vmul.f32 1.0, %v229
  %v231 = vadd.f32 %v208, %v47
  %v232 = vmul.f32 %v230, %v231
  %v234 = vrot.slane %v177, 2
  %v236 = vadd.f32 %v234, %v232
  %v237 = vtanh.pop %v236
  %v238 = vsub.f32 1.0, %v230
  %240 = vrot.lane.b32.xlu0 %v237, 64
  %v241 = vpop.permute.xlu0 %240
  %v243 = vmul.f32 %v238, %v241
  %v244 = vmul.f32 %v230, %v160
  %v245 = vadd.f32 %v243, %v244
  %247 = vst [vmem:[#allocation1] ss:$4 sm:$0xff] %v245
  %v248 = vld.sshfl [vmem:[#allocation1] sm:$0xff pattern:$0x73625140]
  %249 = vrot.lane.b32.xlu0 %v248, 64
  %v250 = vpop.permute.xlu0 %249
  %s252 = scalar_lea.vmem %s3, 2
  %253 = vst.msk [vmem:[%s252] sm:$0x3] %vm167, %v250
  %254 = vst [vmem:[#allocation1] ss:$4 sm:$0xff] %v245
  %v255 = vld.sshfl [vmem:[#allocation1] sm:$0xff pattern:$0x73625140]
  %256 = vrot.lane.b32.xlu0 %v255, 32
  %v257 = vpop.permute.xlu0 %256
  %s259 = scalar_lea.vmem %s27, 12
  %260 = vst.msk [vmem:[%s259] sm:$0x3] %vm167, %v257
  %s261 = scalar_lea.vmem %s0, 8
  %v262 = vld [vmem:[%s261] sm:$0xf]
  %v263 = vpack.c.bf16 %v245, %v245
  %265 = vrot.lane.b32.xlu0 %v263, 64
  %v266 = vpop.permute.xlu0 %265
  %v268 = vsel %vm92, %v266, 0
  %270 = vmatpush.bf16.msra.mxu0 0
  %271 = vmatpush.bf16.msra.mxu0 0
  %272 = vmatpush.bf16.msra.mxu0 0
  %273 = vmatpush.bf16.msra.mxu0 0
  %274 = vmatpush.bf16.msra.mxu0 %v82
  %275 = vmatpush.bf16.msra.mxu0 %v80
  %276 = vmatpush.bf16.msra.mxu0 %v78
  %277 = vmatpush.bf16.msra.mxu0 %v76
  %278 = vmatmul.bf16.gmra.mxu0 %v268
  %v279 = vpop.f32.mrf.mxu0
  %v280 = vadd.f32 0.0, %v279
  %v281 = vpop.f32.mrf.mxu0
  %282 = vdwg.mxu0
  %283 = vmatpush.bf16.msra.mxu0 0
  %284 = vmatpush.bf16.msra.mxu0 0
  %285 = vmatpush.bf16.msra.mxu0 0
  %286 = vmatpush.bf16.msra.mxu0 0
  %287 = vmatpush.bf16.msra.mxu0 %v83
  %288 = vmatpush.bf16.msra.mxu0 %v81
  %289 = vmatpush.bf16.msra.mxu0 %v79
  %290 = vmatpush.bf16.msra.mxu0 %v77
  %291 = vmatmul.bf16.gmra.mxu0 %v268
  %v292 = vpop.f32.mrf.mxu0
  %v293 = vadd.f32 0.0, %v292
  %v294 = vpop.f32.mrf.mxu0
  %295 = vdwg.mxu0
  %v296 = vadd.f32 %v262, %v280
  %v297 = vxor.u32 %v296, 2147483648
  %v298 = vmul.f32 %v297, 1.442695
  %v299 = vpow.pop %v298
  %v300 = vadd.f32 %v299, 1.0
  %v301 = vrcp.pop %v300
  %v302 = vmul.f32 %v300, %v301
  %v303 = vsub.f32 1.0, %v302
  %v304 = vmul.f32 %v301, %v303
  %v305 = vadd.f32 %v301, %v304
  %vm306 = vweird.f32 %v300
  %vm307 = vweird.f32 %v301
  %vm308 = vmor %vm306, %vm307
  %v309 = vsel %vm308, %v301, %v305
  %v310 = vand.u32 2147483647, %v300
  %vm311 = vcmp.eq.f32.partialorder %v310, 8.507059e+37
  %v312 = vand.u32 %v300, 2147483648
  %v313 = vor.u32 1.1754944e-38, %v312
  %v314 = vsel %vm311, %v313, %v309
  %v315 = vmul.f32 1.0, %v314
  %v316 = vadd.f32 %v293, %v47
  %v317 = vmul.f32 %v315, %v316
  %v319 = vrot.slane %v262, 2
  %v321 = vadd.f32 %v319, %v317
  %v322 = vtanh.pop %v321
  %v323 = vsub.f32 1.0, %v315
  %325 = vrot.lane.b32.xlu0 %v322, 64
  %v326 = vpop.permute.xlu0 %325
  %v328 = vmul.f32 %v323, %v326
  %v329 = vmul.f32 %v315, %v245
  %v330 = vadd.f32 %v328, %v329
  %332 = vst [vmem:[#allocation1] ss:$4 sm:$0xff] %v330
  %v333 = vld.sshfl [vmem:[#allocation1] sm:$0xff pattern:$0x73625140]
  %334 = vrot.lane.b32.xlu0 %v333, 64
  %v335 = vpop.permute.xlu0 %334
  %s337 = scalar_lea.vmem %s3, 4
  %338 = vst.msk [vmem:[%s337] sm:$0x3] %vm167, %v335
  %339 = vst [vmem:[#allocation1] ss:$4 sm:$0xff] %v330
  %v340 = vld.sshfl [vmem:[#allocation1] sm:$0xff pattern:$0x73625140]
  %341 = vrot.lane.b32.xlu0 %v340, 32
  %v342 = vpop.permute.xlu0 %341
  %s344 = scalar_lea.vmem %s27, 10
  %345 = vst.msk [vmem:[%s344] sm:$0x3] %vm167, %v342
  %s346 = scalar_lea.vmem %s0, 12
  %v347 = vld [vmem:[%s346] sm:$0xf]
  %v348 = vpack.c.bf16 %v330, %v330
  %350 = vrot.lane.b32.xlu0 %v348, 64
  %v351 = vpop.permute.xlu0 %350
  %v353 = vsel %vm92, %v351, 0
  %355 = vmatpush.bf16.msra.mxu0 0
  %356 = vmatpush.bf16.msra.mxu0 0
  %357 = vmatpush.bf16.msra.mxu0 0
  %358 = vmatpush.bf16.msra.mxu0 0
  %359 = vmatpush.bf16.msra.mxu0 %v82
  %360 = vmatpush.bf16.msra.mxu0 %v80
  %361 = vmatpush.bf16.msra.mxu0 %v78
  %362 = vmatpush.bf16.msra.mxu0 %v76
  %363 = vmatmul.bf16.gmra.mxu0 %v353
  %v364 = vpop.f32.mrf.mxu0
  %v365 = vadd.f32 0.0, %v364
  %v366 = vpop.f32.mrf.mxu0
  %367 = vdwg.mxu0
  %368 = vmatpush.bf16.msra.mxu0 0
  %369 = vmatpush.bf16.msra.mxu0 0
  %370 = vmatpush.bf16.msra.mxu0 0
  %371 = vmatpush.bf16.msra.mxu0 0
  %372 = vmatpush.bf16.msra.mxu0 %v83
  %373 = vmatpush.bf16.msra.mxu0 %v81
  %374 = vmatpush.bf16.msra.mxu0 %v79
  %375 = vmatpush.bf16.msra.mxu0 %v77
  %376 = vmatmul.bf16.gmra.mxu0 %v353
  %v377 = vpop.f32.mrf.mxu0
  %v378 = vadd.f32 0.0, %v377
  %v379 = vpop.f32.mrf.mxu0
  %380 = vdwg.mxu0
  %v381 = vadd.f32 %v347, %v365
  %v382 = vxor.u32 %v381, 2147483648
  %v383 = vmul.f32 %v382, 1.442695
  %v384 = vpow.pop %v383
  %v385 = vadd.f32 %v384, 1.0
  %v386 = vrcp.pop %v385
  %v387 = vmul.f32 %v385, %v386
  %v388 = vsub.f32 1.0, %v387
  %v389 = vmul.f32 %v386, %v388
  %v390 = vadd.f32 %v386, %v389
  %vm391 = vweird.f32 %v385
  %vm392 = vweird.f32 %v386
  %vm393 = vmor %vm391, %vm392
  %v394 = vsel %vm393, %v386, %v390
  %v395 = vand.u32 2147483647, %v385
  %vm396 = vcmp.eq.f32.partialorder %v395, 8.507059e+37
  %v397 = vand.u32 %v385, 2147483648
  %v398 = vor.u32 1.1754944e-38, %v397
  %v399 = vsel %vm396, %v398, %v394
  %v400 = vmul.f32 1.0, %v399
  %v401 = vadd.f32 %v378, %v47
  %v402 = vmul.f32 %v400, %v401
  %v404 = vrot.slane %v347, 2
  %v406 = vadd.f32 %v404, %v402
  %v407 = vtanh.pop %v406
  %v408 = vsub.f32 1.0, %v400
  %410 = vrot.lane.b32.xlu0 %v407, 64
  %v411 = vpop.permute.xlu0 %410
  %v413 = vmul.f32 %v408, %v411
  %v414 = vmul.f32 %v400, %v330
  %v415 = vadd.f32 %v413, %v414
  %417 = vst [vmem:[#allocation1] ss:$4 sm:$0xff] %v415
  %v418 = vld.sshfl [vmem:[#allocation1] sm:$0xff pattern:$0x73625140]
  %419 = vrot.lane.b32.xlu0 %v418, 64
  %v420 = vpop.permute.xlu0 %419
  %s422 = scalar_lea.vmem %s3, 6
  %423 = vst.msk [vmem:[%s422] sm:$0x3] %vm167, %v420
  %424 = vst [vmem:[#allocation1] ss:$4 sm:$0xff] %v415
  %v425 = vld.sshfl [vmem:[#allocation1] sm:$0xff pattern:$0x73625140]
  %426 = vrot.lane.b32.xlu0 %v425, 32
  %v427 = vpop.permute.xlu0 %426
  %s429 = scalar_lea.vmem %s27, 8
  %430 = vst.msk [vmem:[%s429] sm:$0x3] %vm167, %v427
  %s431 = scalar_lea.vmem %s0, 16
  %v432 = vld [vmem:[%s431] sm:$0xf]
  %v433 = vpack.c.bf16 %v415, %v415
  %435 = vrot.lane.b32.xlu0 %v433, 64
  %v436 = vpop.permute.xlu0 %435
  %v438 = vsel %vm92, %v436, 0
  %440 = vmatpush.bf16.msra.mxu0 0
  %441 = vmatpush.bf16.msra.mxu0 0
  %442 = vmatpush.bf16.msra.mxu0 0
  %443 = vmatpush.bf16.msra.mxu0 0
  %444 = vmatpush.bf16.msra.mxu0 %v82
  %445 = vmatpush.bf16.msra.mxu0 %v80
  %446 = vmatpush.bf16.msra.mxu0 %v78
  %447 = vmatpush.bf16.msra.mxu0 %v76
  %448 = vmatmul.bf16.gmra.mxu0 %v438
  %v449 = vpop.f32.mrf.mxu0
  %v450 = vadd.f32 0.0, %v449
  %v451 = vpop.f32.mrf.mxu0
  %452 = vdwg.mxu0
  %453 = vmatpush.bf16.msra.mxu0 0
  %454 = vmatpush.bf16.msra.mxu0 0
  %455 = vmatpush.bf16.msra.mxu0 0
  %456 = vmatpush.bf16.msra.mxu0 0
  %457 = vmatpush.bf16.msra.mxu0 %v83
  %458 = vmatpush.bf16.msra.mxu0 %v81
  %459 = vmatpush.bf16.msra.mxu0 %v79
  %460 = vmatpush.bf16.msra.mxu0 %v77
  %461 = vmatmul.bf16.gmra.mxu0 %v438
  %v462 = vpop.f32.mrf.mxu0
  %v463 = vadd.f32 0.0, %v462
  %v464 = vpop.f32.mrf.mxu0
  %465 = vdwg.mxu0
  %v466 = vadd.f32 %v432, %v450
  %v467 = vxor.u32 %v466, 2147483648
  %v468 = vmul.f32 %v467, 1.442695
  %v469 = vpow.pop %v468
  %v470 = vadd.f32 %v469, 1.0
  %v471 = vrcp.pop %v470
  %v472 = vmul.f32 %v470, %v471
  %v473 = vsub.f32 1.0, %v472
  %v474 = vmul.f32 %v471, %v473
  %v475 = vadd.f32 %v471, %v474
  %vm476 = vweird.f32 %v470
  %vm477 = vweird.f32 %v471
  %vm478 = vmor %vm476, %vm477
  %v479 = vsel %vm478, %v471, %v475
  %v480 = vand.u32 2147483647, %v470
  %vm481 = vcmp.eq.f32.partialorder %v480, 8.507059e+37
  %v482 = vand.u32 %v470, 2147483648
  %v483 = vor.u32 1.1754944e-38, %v482
  %v484 = vsel %vm481, %v483, %v479
  %v485 = vmul.f32 1.0, %v484
  %v486 = vadd.f32 %v463, %v47
  %v487 = vmul.f32 %v485, %v486
  %v489 = vrot.slane %v432, 2
  %v491 = vadd.f32 %v489, %v487
  %v492 = vtanh.pop %v491
  %v493 = vsub.f32 1.0, %v485
  %495 = vrot.lane.b32.xlu0 %v492, 64
  %v496 = vpop.permute.xlu0 %495
  %v498 = vmul.f32 %v493, %v496
  %v499 = vmul.f32 %v485, %v415
  %v500 = vadd.f32 %v498, %v499
  %502 = vst [vmem:[#allocation1] ss:$4 sm:$0xff] %v500
  %v503 = vld.sshfl [vmem:[#allocation1] sm:$0xff pattern:$0x73625140]
  %504 = vrot.lane.b32.xlu0 %v503, 64
  %v505 = vpop.permute.xlu0 %504
  %s507 = scalar_lea.vmem %s3, 8
  %508 = vst.msk [vmem:[%s507] sm:$0x3] %vm167, %v505
  %509 = vst [vmem:[#allocation1] ss:$4 sm:$0xff] %v500
  %v510 = vld.sshfl [vmem:[#allocation1] sm:$0xff pattern:$0x73625140]
  %511 = vrot.lane.b32.xlu0 %v510, 32
  %v512 = vpop.permute.xlu0 %511
  %s514 = scalar_lea.vmem %s27, 6
  %515 = vst.msk [vmem:[%s514] sm:$0x3] %vm167, %v512
  %s516 = scalar_lea.vmem %s0, 20
  %v517 = vld [vmem:[%s516] sm:$0xf]
  %v518 = vpack.c.bf16 %v500, %v500
  %520 = vrot.lane.b32.xlu0 %v518, 64
  %v521 = vpop.permute.xlu0 %520
  %v523 = vsel %vm92, %v521, 0
  %525 = vmatpush.bf16.msra.mxu0 0
  %526 = vmatpush.bf16.msra.mxu0 0
  %527 = vmatpush.bf16.msra.mxu0 0
  %528 = vmatpush.bf16.msra.mxu0 0
  %529 = vmatpush.bf16.msra.mxu0 %v82
  %530 = vmatpush.bf16.msra.mxu0 %v80
  %531 = vmatpush.bf16.msra.mxu0 %v78
  %532 = vmatpush.bf16.msra.mxu0 %v76
  %533 = vmatmul.bf16.gmra.mxu0 %v523
  %v534 = vpop.f32.mrf.mxu0
  %v535 = vadd.f32 0.0, %v534
  %v536 = vpop.f32.mrf.mxu0
  %537 = vdwg.mxu0
  %538 = vmatpush.bf16.msra.mxu0 0
  %539 = vmatpush.bf16.msra.mxu0 0
  %540 = vmatpush.bf16.msra.mxu0 0
  %541 = vmatpush.bf16.msra.mxu0 0
  %542 = vmatpush.bf16.msra.mxu0 %v83
  %543 = vmatpush.bf16.msra.mxu0 %v81
  %544 = vmatpush.bf16.msra.mxu0 %v79
  %545 = vmatpush.bf16.msra.mxu0 %v77
  %546 = vmatmul.bf16.gmra.mxu0 %v523
  %v547 = vpop.f32.mrf.mxu0
  %v548 = vadd.f32 0.0, %v547
  %v549 = vpop.f32.mrf.mxu0
  %550 = vdwg.mxu0
  %v551 = vadd.f32 %v517, %v535
  %v552 = vxor.u32 %v551, 2147483648
  %v553 = vmul.f32 %v552, 1.442695
  %v554 = vpow.pop %v553
  %v555 = vadd.f32 %v554, 1.0
  %v556 = vrcp.pop %v555
  %v557 = vmul.f32 %v555, %v556
  %v558 = vsub.f32 1.0, %v557
  %v559 = vmul.f32 %v556, %v558
  %v560 = vadd.f32 %v556, %v559
  %vm561 = vweird.f32 %v555
  %vm562 = vweird.f32 %v556
  %vm563 = vmor %vm561, %vm562
  %v564 = vsel %vm563, %v556, %v560
  %v565 = vand.u32 2147483647, %v555
  %vm566 = vcmp.eq.f32.partialorder %v565, 8.507059e+37
  %v567 = vand.u32 %v555, 2147483648
  %v568 = vor.u32 1.1754944e-38, %v567
  %v569 = vsel %vm566, %v568, %v564
  %v570 = vmul.f32 1.0, %v569
  %v571 = vadd.f32 %v548, %v47
  %v572 = vmul.f32 %v570, %v571
  %v574 = vrot.slane %v517, 2
  %v576 = vadd.f32 %v574, %v572
  %v577 = vtanh.pop %v576
  %v578 = vsub.f32 1.0, %v570
  %580 = vrot.lane.b32.xlu0 %v577, 64
  %v581 = vpop.permute.xlu0 %580
  %v583 = vmul.f32 %v578, %v581
  %v584 = vmul.f32 %v570, %v500
  %v585 = vadd.f32 %v583, %v584
  %587 = vst [vmem:[#allocation1] ss:$4 sm:$0xff] %v585
  %v588 = vld.sshfl [vmem:[#allocation1] sm:$0xff pattern:$0x73625140]
  %589 = vrot.lane.b32.xlu0 %v588, 64
  %v590 = vpop.permute.xlu0 %589
  %s592 = scalar_lea.vmem %s3, 10
  %593 = vst.msk [vmem:[%s592] sm:$0x3] %vm167, %v590
  %594 = vst [vmem:[#allocation1] ss:$4 sm:$0xff] %v585
  %v595 = vld.sshfl [vmem:[#allocation1] sm:$0xff pattern:$0x73625140]
  %596 = vrot.lane.b32.xlu0 %v595, 32
  %v597 = vpop.permute.xlu0 %596
  %s599 = scalar_lea.vmem %s27, 4
  %600 = vst.msk [vmem:[%s599] sm:$0x3] %vm167, %v597
  %s601 = scalar_lea.vmem %s0, 24
  %v602 = vld [vmem:[%s601] sm:$0xf]
  %v603 = vpack.c.bf16 %v585, %v585
  %605 = vrot.lane.b32.xlu0 %v603, 64
  %v606 = vpop.permute.xlu0 %605
  %v608 = vsel %vm92, %v606, 0
  %610 = vmatpush.bf16.msra.mxu0 0
  %611 = vmatpush.bf16.msra.mxu0 0
  %612 = vmatpush.bf16.msra.mxu0 0
  %613 = vmatpush.bf16.msra.mxu0 0
  %614 = vmatpush.bf16.msra.mxu0 %v82
  %615 = vmatpush.bf16.msra.mxu0 %v80
  %616 = vmatpush.bf16.msra.mxu0 %v78
  %617 = vmatpush.bf16.msra.mxu0 %v76
  %618 = vmatmul.bf16.gmra.mxu0 %v608
  %v619 = vpop.f32.mrf.mxu0
  %v620 = vadd.f32 0.0, %v619
  %v621 = vpop.f32.mrf.mxu0
  %622 = vdwg.mxu0
  %623 = vmatpush.bf16.msra.mxu0 0
  %624 = vmatpush.bf16.msra.mxu0 0
  %625 = vmatpush.bf16.msra.mxu0 0
  %626 = vmatpush.bf16.msra.mxu0 0
  %627 = vmatpush.bf16.msra.mxu0 %v83
  %628 = vmatpush.bf16.msra.mxu0 %v81
  %629 = vmatpush.bf16.msra.mxu0 %v79
  %630 = vmatpush.bf16.msra.mxu0 %v77
  %631 = vmatmul.bf16.gmra.mxu0 %v608
  %v632 = vpop.f32.mrf.mxu0
  %v633 = vadd.f32 0.0, %v632
  %v634 = vpop.f32.mrf.mxu0
  %635 = vdwg.mxu0
  %v636 = vadd.f32 %v602, %v620
  %v637 = vxor.u32 %v636, 2147483648
  %v638 = vmul.f32 %v637, 1.442695
  %v639 = vpow.pop %v638
  %v640 = vadd.f32 %v639, 1.0
  %v641 = vrcp.pop %v640
  %v642 = vmul.f32 %v640, %v641
  %v643 = vsub.f32 1.0, %v642
  %v644 = vmul.f32 %v641, %v643
  %v645 = vadd.f32 %v641, %v644
  %vm646 = vweird.f32 %v640
  %vm647 = vweird.f32 %v641
  %vm648 = vmor %vm646, %vm647
  %v649 = vsel %vm648, %v641, %v645
  %v650 = vand.u32 2147483647, %v640
  %vm651 = vcmp.eq.f32.partialorder %v650, 8.507059e+37
  %v652 = vand.u32 %v640, 2147483648
  %v653 = vor.u32 1.1754944e-38, %v652
  %v654 = vsel %vm651, %v653, %v649
  %v655 = vmul.f32 1.0, %v654
  %v656 = vadd.f32 %v633, %v47
  %v657 = vmul.f32 %v655, %v656
  %v659 = vrot.slane %v602, 2
  %v661 = vadd.f32 %v659, %v657
  %v662 = vtanh.pop %v661
  %v663 = vsub.f32 1.0, %v655
  %665 = vrot.lane.b32.xlu0 %v662, 64
  %v666 = vpop.permute.xlu0 %665
  %v668 = vmul.f32 %v663, %v666
  %v669 = vmul.f32 %v655, %v585
  %v670 = vadd.f32 %v668, %v669
  %672 = vst [vmem:[#allocation1] ss:$4 sm:$0xff] %v670
  %v673 = vld.sshfl [vmem:[#allocation1] sm:$0xff pattern:$0x73625140]
  %674 = vrot.lane.b32.xlu0 %v673, 64
  %v675 = vpop.permute.xlu0 %674
  %s677 = scalar_lea.vmem %s3, 12
  %678 = vst.msk [vmem:[%s677] sm:$0x3] %vm167, %v675
  %679 = vst [vmem:[#allocation1] ss:$4 sm:$0xff] %v670
  %v680 = vld.sshfl [vmem:[#allocation1] sm:$0xff pattern:$0x73625140]
  %681 = vrot.lane.b32.xlu0 %v680, 32
  %v682 = vpop.permute.xlu0 %681
  %s684 = scalar_lea.vmem %s27, 2
  %685 = vst.msk [vmem:[%s684] sm:$0x3] %vm167, %v682
  %s686 = scalar_lea.vmem %s0, 28
  %v687 = vld [vmem:[%s686] sm:$0xf]
  %v688 = vpack.c.bf16 %v670, %v670
  %690 = vrot.lane.b32.xlu0 %v688, 64
  %v691 = vpop.permute.xlu0 %690
  %v693 = vsel %vm92, %v691, 0
  %695 = vmatpush.bf16.msra.mxu0 0
  %696 = vmatpush.bf16.msra.mxu0 0
  %697 = vmatpush.bf16.msra.mxu0 0
  %698 = vmatpush.bf16.msra.mxu0 0
  %699 = vmatpush.bf16.msra.mxu0 %v82
  %700 = vmatpush.bf16.msra.mxu0 %v80
  %701 = vmatpush.bf16.msra.mxu0 %v78
  %702 = vmatpush.bf16.msra.mxu0 %v76
  %703 = vmatmul.bf16.gmra.mxu0 %v693
  %v704 = vpop.f32.mrf.mxu0
  %v705 = vadd.f32 0.0, %v704
  %v706 = vpop.f32.mrf.mxu0
  %707 = vdwg.mxu0
  %708 = vmatpush.bf16.msra.mxu0 0
  %709 = vmatpush.bf16.msra.mxu0 0
  %710 = vmatpush.bf16.msra.mxu0 0
  %711 = vmatpush.bf16.msra.mxu0 0
  %712 = vmatpush.bf16.msra.mxu0 %v83
  %713 = vmatpush.bf16.msra.mxu0 %v81
  %714 = vmatpush.bf16.msra.mxu0 %v79
  %715 = vmatpush.bf16.msra.mxu0 %v77
  %716 = vmatmul.bf16.gmra.mxu0 %v693
  %v717 = vpop.f32.mrf.mxu0
  %v718 = vadd.f32 0.0, %v717
  %v719 = vpop.f32.mrf.mxu0
  %720 = vdwg.mxu0
  %v721 = vadd.f32 %v687, %v705
  %v722 = vxor.u32 %v721, 2147483648
  %v723 = vmul.f32 %v722, 1.442695
  %v724 = vpow.pop %v723
  %v725 = vadd.f32 %v724, 1.0
  %v726 = vrcp.pop %v725
  %v727 = vmul.f32 %v725, %v726
  %v728 = vsub.f32 1.0, %v727
  %v729 = vmul.f32 %v726, %v728
  %v730 = vadd.f32 %v726, %v729
  %vm731 = vweird.f32 %v725
  %vm732 = vweird.f32 %v726
  %vm733 = vmor %vm731, %vm732
  %v734 = vsel %vm733, %v726, %v730
  %v735 = vand.u32 2147483647, %v725
  %vm736 = vcmp.eq.f32.partialorder %v735, 8.507059e+37
  %v737 = vand.u32 %v725, 2147483648
  %v738 = vor.u32 1.1754944e-38, %v737
  %v739 = vsel %vm736, %v738, %v734
  %v740 = vmul.f32 1.0, %v739
  %v741 = vadd.f32 %v718, %v47
  %v742 = vmul.f32 %v740, %v741
  %v744 = vrot.slane %v687, 2
  %v746 = vadd.f32 %v744, %v742
  %v747 = vtanh.pop %v746
  %v748 = vsub.f32 1.0, %v740
  %750 = vrot.lane.b32.xlu0 %v747, 64
  %v751 = vpop.permute.xlu0 %750
  %v753 = vmul.f32 %v748, %v751
  %v754 = vmul.f32 %v740, %v670
  %v755 = vadd.f32 %v753, %v754
  %757 = vst [vmem:[#allocation1] ss:$4 sm:$0xff] %v755
  %v758 = vld.sshfl [vmem:[#allocation1] sm:$0xff pattern:$0x73625140]
  %759 = vrot.lane.b32.xlu0 %v758, 64
  %v760 = vpop.permute.xlu0 %759
  %s762 = scalar_lea.vmem %s3, 14
  %763 = vst.msk [vmem:[%s762] sm:$0x3] %vm167, %v760
  %764 = vst [vmem:[#allocation1] ss:$4 sm:$0xff] %v755
  %v765 = vld.sshfl [vmem:[#allocation1] sm:$0xff pattern:$0x73625140]
  %766 = vrot.lane.b32.xlu0 %v765, 32
  %v767 = vpop.permute.xlu0 %766
  %769 = vst.msk [vmem:[%s27] sm:$0x3] %vm167, %v767
  %770 = vst [vmem:[#allocation1] ss:$4 sm:$0xff] %v755
  %v771 = vld.sshfl [vmem:[#allocation1] sm:$0xff pattern:$0x73625140]
  %772 = vrot.lane.b32.xlu0 %v771, 64
  %v773 = vpop.permute.xlu0 %772
  %vm775 = vcmask 517120
  %776 = vst.msk [vmem:[#allocation2] sm:$0x3] %vm775, %v773
  %s777 = ssub.s32 0, 0
  %s778 = smul.u32 8, %s777
  %p779 = scmp.lt.s32.totalorder %s778, 7
  %s780 = scalar_select %p779, %s778, 7
  %s781 = smul.addr %s780, 2
  %s782 = scalar_lea.vmem %s4, %s781
  // Predicated region
  $region18: #{bilstm_forward.3} parent=0 // pred_check
    _
  $region19: #{bilstm_forward.3} parent=0 // pred_check_branch
    %784 = sbr.rel (0) target = $region21
  $region20: #{bilstm_forward.3} parent=0 // pred_region
    _
  $region21: #{bilstm_forward.3} parent=0 // pred_fallthru
    _
  // Predicated region
  $region22: #{bilstm_forward.3} parent=0 // pred_check
    _
  $region23: #{bilstm_forward.3} parent=0 // pred_check_branch
    %786 = sbr.rel (0) target = $region25
  $region24: #{bilstm_forward.3} parent=0 // pred_region
    %s787 = ssub.s32 0, 0
    %s788 = smul.u32 8, %s787
  $region25: #{bilstm_forward.3} parent=0 // pred_fallthru
    _
  // Predicated region
  $region26: #{bilstm_forward.3} parent=0 // pred_check
    _
  $region27: #{bilstm_forward.3} parent=0 // pred_check_branch
    %790 = sbr.rel (0) target = $region29
  $region28: #{bilstm_forward.3} parent=0 // pred_region
    _
  $region29: #{bilstm_forward.3} parent=0 // pred_fallthru
    _
  // Predicated region
  $region30: #{bilstm_forward.3} parent=0 // pred_check
    _
  $region31: #{bilstm_forward.3} parent=0 // pred_check_branch
    %792 = sbr.rel (0) target = $region33
  $region32: #{bilstm_forward.3} parent=0 // pred_region
    %s793 = ssub.s32 0, 0
    %s794 = smul.u32 8, %s793
    %p795 = scmp.lt.s32.totalorder %s794, 7
    %s796 = scalar_select %p795, %s794, 7
    %s797 = smul.addr %s796, 2
    %s798 = scalar_lea.vmem %s4, %s797
  $region33: #{bilstm_forward.3} parent=0 // pred_fallthru
    _

</llo_original>
